<compile_context>
chip_gen: v5e
topology: v5e:2x2
jax: 0.10.0
libtpu: 0.0.40
codegen_flags: <defaults>
</compile_context>

<pallas_src>
import jax
import jax.numpy as jnp
from jax.experimental import pallas as pl
from jax.experimental.pallas import tpu as pltpu

EPS = 1e-5  # PyTorch BatchNorm1d default


def _pick_tile(dim, want, quantum):
    """Largest legal tile: `want` if it divides `dim` and is `quantum`-aligned, else full `dim`."""
    want = min(want, dim)
    if dim % want == 0 and (want % quantum == 0 or want == dim):
        return want
    return dim


# ---------------------------------------------------------------------------
# Kernel 1: ResidualConnection  (batch collapsed into M, K-tiled over fine_res)
#   y[m, nc] = relu( (sum_nf x2[m, nf] * Wt[nf, nc]) * scale[nc] + shift[nc] )
#   with x2 = reshape(x, (B*F, Nf)) and Wt = W^T
# ---------------------------------------------------------------------------
def _residual_kernel(x_ref, wt_ref, scale_ref, shift_ref, o_ref, acc_ref):
    # x: (tm, tk); wt: (tk, Nc); scale/shift: (1, Nc); o: (tm, Nc); acc: (tm, Nc) f32
    k = pl.program_id(1)

    @pl.when(k == 0)
    def _():
        acc_ref[...] = jnp.zeros_like(acc_ref)

    acc_ref[...] += jnp.dot(x_ref[...], wt_ref[...],
                            preferred_element_type=jnp.float32)

    @pl.when(k == pl.num_programs(1) - 1)
    def _():
        y = acc_ref[...] * scale_ref[...] + shift_ref[...]   # folded BN, f32
        o_ref[...] = jnp.maximum(y, 0.0).astype(o_ref.dtype)


def residual_connection(x, w, b, gamma, beta, mean, var, *, tm=256, tk=256):
    """ResidualConnection.forward: x (B, F, Nf) -> relu(bn(conv(x^T)))^T : (B, F, Nc)."""
    B, F, Nf = x.shape
    Nc = w.shape[0]

    scale = gamma * jax.lax.rsqrt(var + EPS)        # fold BN into per-channel affine
    shift = beta + (b - mean) * scale
    wt = jnp.transpose(w)                           # (Nf, Nc): Nc on the lane axis
    scale2 = scale.reshape(1, Nc)
    shift2 = shift.reshape(1, Nc)

    # Collapse (B, F) into a single M axis: one batched matmul instead of B tiny ones.
    M = B * F
    x2 = x.reshape(M, Nf)                           # contiguous -> free reshape
    tm = _pick_tile(M, tm, 8)
    tk = _pick_tile(Nf, tk, 128)
    nm, nk = M // tm, Nf // tk

    cost = pl.CostEstimate(
        flops=2 * M * Nf * Nc,
        transcendentals=0,
        bytes_accessed=4 * (M * Nf + Nf * Nc + M * Nc + 2 * Nc))

    y2 = pl.pallas_call(
        _residual_kernel,
        out_shape=jax.ShapeDtypeStruct((M, Nc), x.dtype),
        grid_spec=pltpu.PrefetchScalarGridSpec(
            num_scalar_prefetch=0,
            grid=(nm, nk),                                        # reduction axis last
            in_specs=[
                pl.BlockSpec((tm, tk), lambda m, k: (m, k)),
                pl.BlockSpec((tk, Nc), lambda m, k: (k, 0)),
                pl.BlockSpec((1, Nc), lambda m, k: (0, 0)),
                pl.BlockSpec((1, Nc), lambda m, k: (0, 0)),
            ],
            out_specs=pl.BlockSpec((tm, Nc), lambda m, k: (m, 0)),
            scratch_shapes=[pltpu.VMEM((tm, Nc), jnp.float32)],
        ),
        compiler_params=pltpu.CompilerParams(
            dimension_semantics=("parallel", "arbitrary")),
        cost_estimate=cost,
    )(x2, wt, scale2, shift2)
    return y2.reshape(B, F, Nc)


# ---------------------------------------------------------------------------
# Kernel 2: feat = bn1(conv1(feat1_ + feat2))
#   out[b, co, l] = (sum_ci W[co, ci] * (a + b)[b, ci, l]) * scale[co] + shift[co]
#   grid over (batch, L-tiles); lane axis = tl >= 128 -> lane-dense stores.
# ---------------------------------------------------------------------------
def _add_conv_bn_kernel(a_ref, b_ref, w_ref, scale_ref, shift_ref, o_ref):
    # a, b: (1, F, tl); w: (F, F); scale/shift: (F, 1); o: (1, F, tl)
    s = a_ref[0] + b_ref[0]                                   # elementwise add in f32
    y = jnp.dot(w_ref[...], s, preferred_element_type=jnp.float32)
    o_ref[0] = (y * scale_ref[...] + shift_ref[...]).astype(o_ref.dtype)


def add_conv_bn(a, b, w, bias, gamma, beta, mean, var, *, tl=512):
    """(a + b): (B, F, L) -> Conv1d(F->F, k=1) -> BatchNorm1d(F): (B, F, L)."""
    B, F, L = a.shape
    scale = gamma * jax.lax.rsqrt(var + EPS)
    shift = beta + (bias - mean) * scale
    scale2 = scale.reshape(F, 1)
    shift2 = shift.reshape(F, 1)

    tl = _pick_tile(L, tl, 128)
    nl = L // tl

    cost = pl.CostEstimate(
        flops=2 * B * F * F * L + B * F * L,
        transcendentals=0,
        bytes_accessed=4 * (3 * B * F * L + F * F + 2 * F))

    return pl.pallas_call(
        _add_conv_bn_kernel,
        out_shape=jax.ShapeDtypeStruct((B, F, L), a.dtype),
        grid_spec=pltpu.PrefetchScalarGridSpec(
            num_scalar_prefetch=0,
            grid=(B, nl),
            in_specs=[
                pl.BlockSpec((1, F, tl), lambda bi, li: (bi, 0, li)),
                pl.BlockSpec((1, F, tl), lambda bi, li: (bi, 0, li)),
                pl.BlockSpec((F, F), lambda bi, li: (0, 0)),      # weight DMA'd once
                pl.BlockSpec((F, 1), lambda bi, li: (0, 0)),
                pl.BlockSpec((F, 1), lambda bi, li: (0, 0)),
            ],
            out_specs=pl.BlockSpec((1, F, tl), lambda bi, li: (bi, 0, li)),
        ),
        compiler_params=pltpu.CompilerParams(
            dimension_semantics=("parallel", "parallel")),
        cost_estimate=cost,
    )(a, b, w, scale2, shift2)


# ---------------------------------------------------------------------------
# ndnet.forward (glue in plain JAX, hot paths in Pallas)
# ---------------------------------------------------------------------------
def ndnet_forward(params, feat1, down1, downcov1, feat2, feat1_ndt2):
    """
    Args (all produced upstream of ndnet itself):
      feat1       : (B, feature_dim, fine_res)    -- ndtnet1(points1, covariances1)
      down1       : (B, point_dim, coarse_res)    -- sampler1.prune(coarse_res)
      downcov1    : (B, cov_dim, coarse_res)      -- sampler1.prune(coarse_res)
      feat2       : (B, feature_dim, coarse_res)  -- ndtnet2(points2, covariances2)
      feat1_ndt2  : (B, feature_dim, coarse_res)  -- ndtnet2(down1, downcov1_cat)
    Returns:
      (feat, feat1, downcov1_cat) -- module returns (feat, feat1); the cat is the
                                     tensor that would feed ndtnet2 (kept for checking)
    """
    # feat1_ = self.residual(feat1)
    feat1_res = residual_connection(
        feat1, params["res_w"], params["res_b"],
        params["res_gamma"], params["res_beta"], params["res_mean"], params["res_var"])

    # downcov1 = torch.cat([down1, downcov1, feat1_], dim=1)
    # TODO(synk): the concat stays in XLA -- the feature slice starts at channel
    # offset point_dim + cov_dim (= 12), which is not sublane-aligned, so fusing it
    # into the residual kernel's output block would require unaligned sublane stores.
    downcov1_cat = jnp.concatenate([down1, downcov1, feat1_res], axis=1)

    # TODO(synk): feat1_ = self.ndtnet2(down1, downcov1_cat) -- NDTNet not provided,
    # its output is supplied as `feat1_ndt2`.

    # feat_ = feat1_ + feat2 ; feat = self.bn1(self.conv1(feat_))
    feat = add_conv_bn(
        feat1_ndt2, feat2, params["c1_w"], params["c1_b"],
        params["c1_gamma"], params["c1_beta"], params["c1_mean"], params["c1_var"])

    return feat, feat1, downcov1_cat


# ---------------------------------------------------------------------------
# Pure-JAX reference for validation
# ---------------------------------------------------------------------------
def ndnet_forward_ref(params, feat1, down1, downcov1, feat2, feat1_ndt2):
    hi = jax.lax.Precision.HIGHEST

    def bn(x, gamma, beta, mean, var):
        return (x - mean[None, :, None]) / jnp.sqrt(var[None, :, None] + EPS) \
               * gamma[None, :, None] + beta[None, :, None]

    xT = jnp.swapaxes(feat1, 1, 2)                                   # (B, Nf, F)
    y = jnp.einsum("on,bnf->bof", params["res_w"], xT, precision=hi) \
        + params["res_b"][None, :, None]
    y = jnp.maximum(bn(y, params["res_gamma"], params["res_beta"],
                       params["res_mean"], params["res_var"]), 0.0)
    feat1_res = jnp.swapaxes(y, 1, 2)                                # (B, F, Nc)
    downcov1_cat = jnp.concatenate([down1, downcov1, feat1_res], axis=1)

    feat_ = feat1_ndt2 + feat2
    z = jnp.einsum("oi,bil->bol", params["c1_w"], feat_, precision=hi) \
        + params["c1_b"][None, :, None]
    feat = bn(z, params["c1_gamma"], params["c1_beta"],
              params["c1_mean"], params["c1_var"])
    return feat, feat1, downcov1_cat


# ---------------------------------------------------------------------------
# Deterministic parameter init (shapes follow the module __init__)
# ---------------------------------------------------------------------------
def init_params(key, fine_res, coarse_res, feature_dim):
    ks = jax.random.split(key, 12)
    f32 = jnp.float32
    return {
        # ResidualConnection(fine_res, coarse_res): Conv1d(fine_res, coarse_res, 1) + BN(coarse_res)
        "res_w": 0.05 * jax.random.normal(ks[0], (coarse_res, fine_res), f32),
        "res_b": 0.05 * jax.random.normal(ks[1], (coarse_res,), f32),
        "res_gamma": 1.0 + 0.1 * jax.random.normal(ks[2], (coarse_res,), f32),
        "res_beta": 0.1 * jax.random.normal(ks[3], (coarse_res,), f32),
        "res_mean": 0.1 * jax.random.normal(ks[4], (coarse_res,), f32),
        "res_var": 0.5 + jnp.abs(jax.random.normal(ks[5], (coarse_res,), f32)),
        # conv1 = Conv1d(feature_dim, feature_dim, 1) + bn1 = BN(feature_dim)
        "c1_w": 0.05 * jax.random.normal(ks[6], (feature_dim, feature_dim), f32),
        "c1_b": 0.05 * jax.random.normal(ks[7], (feature_dim,), f32),
        "c1_gamma": 1.0 + 0.1 * jax.random.normal(ks[8], (feature_dim,), f32),
        "c1_beta": 0.1 * jax.random.normal(ks[9], (feature_dim,), f32),
        "c1_mean": 0.1 * jax.random.normal(ks[10], (feature_dim,), f32),
        "c1_var": 0.5 + jnp.abs(jax.random.normal(ks[11], (feature_dim,), f32)),
    }


if __name__ == "__main__":
    # Small but lane-aligned shapes consistent with the module (point_dim=3, cov_dim=9
    # for 3x3 covariances). Production sizes are feature_dim=1024, fine_res=8160,
    # coarse_res=4080; here they are scaled down but kept multiples of 128 so output
    # stores stay lane-dense and the K-tiling path is exercised (fine_res / tk = 2).
    B, point_dim, cov_dim = 2, 3, 9
    feature_dim, fine_res, coarse_res = 128, 512, 128

    key = jax.random.PRNGKey(0)
    kp, k1, k2, k3, k4, k5 = jax.random.split(key, 6)
    params = init_params(kp, fine_res, coarse_res, feature_dim)

    feat1 = jax.random.normal(k1, (B, feature_dim, fine_res), jnp.float32)
    down1 = jax.random.normal(k2, (B, point_dim, coarse_res), jnp.float32)
    downcov1 = jax.random.normal(k3, (B, cov_dim, coarse_res), jnp.float32)
    feat2 = jax.random.normal(k4, (B, feature_dim, coarse_res), jnp.float32)
    feat1_ndt2 = jax.random.normal(k5, (B, feature_dim, coarse_res), jnp.float32)

    fwd = jax.jit(ndnet_forward)
    feat, feat1_out, cat_out = jax.block_until_ready(
        fwd(params, feat1, down1, downcov1, feat2, feat1_ndt2))
    feat_r, feat1_r, cat_r = ndnet_forward_ref(
        params, feat1, down1, downcov1, feat2, feat1_ndt2)

    assert feat.shape == (B, feature_dim, coarse_res)
    assert cat_out.shape == (B, point_dim + cov_dim + feature_dim, coarse_res)
    assert jnp.allclose(feat, feat_r, atol=1e-3, rtol=1e-3), \
        float(jnp.max(jnp.abs(feat - feat_r)))
    assert jnp.allclose(cat_out, cat_r, atol=1e-3, rtol=1e-3), \
        float(jnp.max(jnp.abs(cat_out - cat_r)))
    assert jnp.allclose(feat1_out, feat1_r)

    print("KERNEL_OK")
</pallas_src>

<mosaic_0001>
module attributes {stable_mosaic.version = 11 : i64} {
  func.func @_add_conv_bn_kernel(%arg0: i32, %arg1: i32, %arg2: memref<1x128x128xf32, #tpu.memory_space<vmem>>, %arg3: memref<1x128x128xf32, #tpu.memory_space<vmem>>, %arg4: memref<128x128xf32, #tpu.memory_space<vmem>>, %arg5: memref<128x1xf32, #tpu.memory_space<vmem>>, %arg6: memref<128x1xf32, #tpu.memory_space<vmem>>, %arg7: memref<1x128x128xf32, #tpu.memory_space<vmem>>) attributes {dimension_semantics = [#tpu.dimension_semantics<parallel>, #tpu.dimension_semantics<parallel>], iteration_bounds = array<i64: 2, 1>, scalar_prefetch = 0 : i64, scratch_operands = 0 : i64, tpu.core_type = #tpu.core_type<tc>, window_params = [{transform_indices = @transform_0, window_bounds = array<i64: 1, 128, 128>}, {transform_indices = @transform_1, window_bounds = array<i64: 1, 128, 128>}, {pipeline_mode = #tpu.pipeline_mode<synchronous>, transform_indices = @transform_2, window_bounds = array<i64: 128, 128>}, {pipeline_mode = #tpu.pipeline_mode<synchronous>, transform_indices = @transform_3, window_bounds = array<i64: 128, 1>}, {pipeline_mode = #tpu.pipeline_mode<synchronous>, transform_indices = @transform_4, window_bounds = array<i64: 128, 1>}, {transform_indices = @transform_5, window_bounds = array<i64: 1, 128, 128>}]} {
    %c0 = arith.constant 0 : index
    %c0_0 = arith.constant 0 : index
    %c0_1 = arith.constant 0 : index
    %0 = vector.load %arg2[%c0, %c0_0, %c0_1] : memref<1x128x128xf32, #tpu.memory_space<vmem>>, vector<1x128x128xf32>
    %1 = vector.shape_cast %0 : vector<1x128x128xf32> to vector<128x128xf32>
    %c0_2 = arith.constant 0 : index
    %c0_3 = arith.constant 0 : index
    %c0_4 = arith.constant 0 : index
    %2 = vector.load %arg3[%c0_2, %c0_3, %c0_4] : memref<1x128x128xf32, #tpu.memory_space<vmem>>, vector<1x128x128xf32>
    %3 = vector.shape_cast %2 : vector<1x128x128xf32> to vector<128x128xf32>
    %4 = arith.addf %1, %3 : vector<128x128xf32>
    %c0_5 = arith.constant 0 : index
    %c0_6 = arith.constant 0 : index
    %5 = vector.load %arg4[%c0_5, %c0_6] : memref<128x128xf32, #tpu.memory_space<vmem>>, vector<128x128xf32>
    %cst = arith.constant dense<0.000000e+00> : vector<128x128xf32>
    %6 = tpu.matmul %5, %4, %cst {dimension_numbers = #tpu.dot_dimension_numbers<[1], [0], [0], [1], [0, 0, 1, 1], [], []>} : vector<128x128xf32>, vector<128x128xf32>, vector<128x128xf32> -> vector<128x128xf32>
    %c0_7 = arith.constant 0 : index
    %c0_8 = arith.constant 0 : index
    %7 = vector.load %arg5[%c0_7, %c0_8] : memref<128x1xf32, #tpu.memory_space<vmem>>, vector<128x1xf32>
    %8 = vector.broadcast %7 : vector<128x1xf32> to vector<128x128xf32>
    %9 = arith.mulf %6, %8 : vector<128x128xf32>
    %c0_9 = arith.constant 0 : index
    %c0_10 = arith.constant 0 : index
    %10 = vector.load %arg6[%c0_9, %c0_10] : memref<128x1xf32, #tpu.memory_space<vmem>>, vector<128x1xf32>
    %11 = vector.broadcast %10 : vector<128x1xf32> to vector<128x128xf32>
    %12 = arith.addf %9, %11 : vector<128x128xf32>
    %c0_11 = arith.constant 0 : index
    %c0_12 = arith.constant 0 : index
    %c0_13 = arith.constant 0 : index
    %13 = vector.load %arg7[%c0_11, %c0_12, %c0_13] : memref<1x128x128xf32, #tpu.memory_space<vmem>>, vector<1x128x128xf32>
    %14 = vector.shape_cast %13 : vector<1x128x128xf32> to vector<128x128xf32>
    %15 = vector.shape_cast %12 : vector<128x128xf32> to vector<1x128x128xf32>
    tpu.vector_store %arg7[%c0_11, %c0_12, %c0_13], %15 {strides = array<i32>} : memref<1x128x128xf32, #tpu.memory_space<vmem>>, vector<1x128x128xf32>,
    return
  }
  func.func @transform_0(%arg0: i32, %arg1: i32) -> (i32, i32, i32) {
    %c0_i32 = arith.constant 0 : i32
    %c0_i32_0 = arith.constant 0 : i32
    return %arg0, %c0_i32, %arg1 : i32, i32, i32
  }
  func.func @transform_1(%arg0: i32, %arg1: i32) -> (i32, i32, i32) {
    %c0_i32 = arith.constant 0 : i32
    %c0_i32_0 = arith.constant 0 : i32
    return %arg0, %c0_i32, %arg1 : i32, i32, i32
  }
  func.func @transform_2(%arg0: i32, %arg1: i32) -> (i32, i32) {
    %c0_i32 = arith.constant 0 : i32
    %c0_i32_0 = arith.constant 0 : i32
    %c0_i32_1 = arith.constant 0 : i32
    return %c0_i32, %c0_i32_0 : i32, i32
  }
  func.func @transform_3(%arg0: i32, %arg1: i32) -> (i32, i32) {
    %c0_i32 = arith.constant 0 : i32
    %c0_i32_0 = arith.constant 0 : i32
    %c0_i32_1 = arith.constant 0 : i32
    return %c0_i32, %c0_i32_0 : i32, i32
  }
  func.func @transform_4(%arg0: i32, %arg1: i32) -> (i32, i32) {
    %c0_i32 = arith.constant 0 : i32
    %c0_i32_0 = arith.constant 0 : i32
    %c0_i32_1 = arith.constant 0 : i32
    return %c0_i32, %c0_i32_0 : i32, i32
  }
  func.func @transform_5(%arg0: i32, %arg1: i32) -> (i32, i32, i32) {
    %c0_i32 = arith.constant 0 : i32
    %c0_i32_0 = arith.constant 0 : i32
    return %arg0, %c0_i32, %arg1 : i32, i32, i32
  }
}

module attributes {stable_mosaic.version = 11 : i64} {
  func.func @_residual_kernel(%arg0: i32, %arg1: i32, %arg2: memref<256x256xf32, #tpu.memory_space<vmem>>, %arg3: memref<256x128xf32, #tpu.memory_space<vmem>>, %arg4: memref<1x128xf32, #tpu.memory_space<vmem>>, %arg5: memref<1x128xf32, #tpu.memory_space<vmem>>, %arg6: memref<256x128xf32, #tpu.memory_space<vmem>>, %arg7: memref<256x128xf32, #tpu.memory_space<vmem>>) attributes {dimension_semantics = [#tpu.dimension_semantics<parallel>, #tpu.dimension_semantics<arbitrary>], iteration_bounds = array<i64: 1, 2>, scalar_prefetch = 0 : i64, scratch_operands = 1 : i64, tpu.core_type = #tpu.core_type<tc>, window_params = [{transform_indices = @transform_0, window_bounds = array<i64: 256, 256>}, {transform_indices = @transform_1, window_bounds = array<i64: 256, 128>}, {pipeline_mode = #tpu.pipeline_mode<synchronous>, transform_indices = @transform_2, window_bounds = array<i64: 1, 128>}, {pipeline_mode = #tpu.pipeline_mode<synchronous>, transform_indices = @transform_3, window_bounds = array<i64: 1, 128>}, {transform_indices = @transform_4, window_bounds = array<i64: 256, 128>}]} {
    %c0_i32 = arith.constant 0 : i32
    %0 = arith.cmpi eq, %arg1, %c0_i32 : i32
    %1 = arith.extui %0 : i1 to i32
    %c0_i32_0 = arith.constant 0 : i32
    %2 = arith.cmpi ne, %1, %c0_i32_0 : i32
    scf.if %2 {
      %cst_9 = arith.constant 0.000000e+00 : f32
      %12 = vector.broadcast %cst_9 : f32 to vector<256x128xf32>
      %c0_10 = arith.constant 0 : index
      %c0_11 = arith.constant 0 : index
      %13 = vector.load %arg7[%c0_10, %c0_11] : memref<256x128xf32, #tpu.memory_space<vmem>>, vector<256x128xf32>
      tpu.vector_store %arg7[%c0_10, %c0_11], %12 {strides = array<i32>} : memref<256x128xf32, #tpu.memory_space<vmem>>, vector<256x128xf32>,
    } else {
    }
    %c0 = arith.constant 0 : index
    %c0_1 = arith.constant 0 : index
    %3 = vector.load %arg7[%c0, %c0_1] : memref<256x128xf32, #tpu.memory_space<vmem>>, vector<256x128xf32>
    %c0_2 = arith.constant 0 : index
    %c0_3 = arith.constant 0 : index
    %4 = vector.load %arg2[%c0_2, %c0_3] : memref<256x256xf32, #tpu.memory_space<vmem>>, vector<256x256xf32>
    %c0_4 = arith.constant 0 : index
    %c0_5 = arith.constant 0 : index
    %5 = vector.load %arg3[%c0_4, %c0_5] : memref<256x128xf32, #tpu.memory_space<vmem>>, vector<256x128xf32>
    %cst = arith.constant dense<0.000000e+00> : vector<256x128xf32>
    %6 = tpu.matmul %4, %5, %cst {dimension_numbers = #tpu.dot_dimension_numbers<[1], [0], [0], [1], [0, 0, 1, 1], [], []>} : vector<256x256xf32>, vector<256x128xf32>, vector<256x128xf32> -> vector<256x128xf32>
    %7 = arith.addf %3, %6 : vector<256x128xf32>
    %c0_6 = arith.constant 0 : index
    %c0_7 = arith.constant 0 : index
    %8 = vector.load %arg7[%c0_6, %c0_7] : memref<256x128xf32, #tpu.memory_space<vmem>>, vector<256x128xf32>
    tpu.vector_store %arg7[%c0_6, %c0_7], %7 {strides = array<i32>} : memref<256x128xf32, #tpu.memory_space<vmem>>, vector<256x128xf32>,
    %c1_i32 = arith.constant 1 : i32
    %9 = arith.cmpi eq, %arg1, %c1_i32 : i32
    %10 = arith.extui %9 : i1 to i32
    %c0_i32_8 = arith.constant 0 : i32
    %11 = arith.cmpi ne, %10, %c0_i32_8 : i32
    scf.if %11 {
      %c0_9 = arith.constant 0 : index
      %c0_10 = arith.constant 0 : index
      %12 = vector.load %arg7[%c0_9, %c0_10] : memref<256x128xf32, #tpu.memory_space<vmem>>, vector<256x128xf32>
      %c0_11 = arith.constant 0 : index
      %c0_12 = arith.constant 0 : index
      %13 = vector.load %arg4[%c0_11, %c0_12] : memref<1x128xf32, #tpu.memory_space<vmem>>, vector<1x128xf32>
      %14 = vector.broadcast %13 : vector<1x128xf32> to vector<256x128xf32>
      %15 = arith.mulf %12, %14 : vector<256x128xf32>
      %c0_13 = arith.constant 0 : index
      %c0_14 = arith.constant 0 : index
      %16 = vector.load %arg5[%c0_13, %c0_14] : memref<1x128xf32, #tpu.memory_space<vmem>>, vector<1x128xf32>
      %17 = vector.broadcast %16 : vector<1x128xf32> to vector<256x128xf32>
      %18 = arith.addf %15, %17 : vector<256x128xf32>
      %cst_15 = arith.constant 0.000000e+00 : f32
      %19 = vector.broadcast %cst_15 : f32 to vector<256x128xf32>
      %20 = arith.maximumf %18, %19 : vector<256x128xf32>
      %c0_16 = arith.constant 0 : index
      %c0_17 = arith.constant 0 : index
      %21 = vector.load %arg6[%c0_16, %c0_17] : memref<256x128xf32, #tpu.memory_space<vmem>>, vector<256x128xf32>
      tpu.vector_store %arg6[%c0_16, %c0_17], %20 {strides = array<i32>} : memref<256x128xf32, #tpu.memory_space<vmem>>, vector<256x128xf32>,
    } else {
    }
    return
  }
  func.func @transform_0(%arg0: i32, %arg1: i32) -> (i32, i32) {
    %c0_i32 = arith.constant 0 : i32
    return %arg0, %arg1 : i32, i32
  }
  func.func @transform_1(%arg0: i32, %arg1: i32) -> (i32, i32) {
    %c0_i32 = arith.constant 0 : i32
    %c0_i32_0 = arith.constant 0 : i32
    return %arg1, %c0_i32 : i32, i32
  }
  func.func @transform_2(%arg0: i32, %arg1: i32) -> (i32, i32) {
    %c0_i32 = arith.constant 0 : i32
    %c0_i32_0 = arith.constant 0 : i32
    %c0_i32_1 = arith.constant 0 : i32
    return %c0_i32, %c0_i32_0 : i32, i32
  }
  func.func @transform_3(%arg0: i32, %arg1: i32) -> (i32, i32) {
    %c0_i32 = arith.constant 0 : i32
    %c0_i32_0 = arith.constant 0 : i32
    %c0_i32_1 = arith.constant 0 : i32
    return %c0_i32, %c0_i32_0 : i32, i32
  }
  func.func @transform_4(%arg0: i32, %arg1: i32) -> (i32, i32) {
    %c0_i32 = arith.constant 0 : i32
    %c0_i32_0 = arith.constant 0 : i32
    return %arg0, %c0_i32 : i32, i32
  }
}

</mosaic_0001>

<llo_original>
// kernel: ndnet_forward.3
$region0: #{ndnet_forward.3}
  #allocation0 [shape = 'u32[]', space=smem, size = 0x4, offset = 0x4, fixed_abs, tag = 'smem constant byte address 0x4 - core index']
  #allocation1 [shape = 'u32[72,128]{1,0:T(1,128)}', space=vmem, size = 0x9000, scoped, tag = 'internal scratch']
  %s0 = inlined_call_operand.vmem [shape: f32[2,128,128], index: 0, kind: input, shape index: {}]
  %s1 = inlined_call_operand.hbm [shape: f32[2,128,128], index: 1, kind: input, shape index: {}]
  %s2 = inlined_call_operand.hbm [shape: f32[128,128], index: 2, kind: input, shape index: {}]
  %s3 = inlined_call_operand.vmem [shape: f32[128,1], index: 3, kind: input, shape index: {}]
  %s4 = inlined_call_operand.vmem [shape: f32[128,1], index: 4, kind: input, shape index: {}]
  %s5 = inlined_call_operand.hbm [shape: f32[2,128,128], index: 5, kind: output, shape index: {}]
  %s6 = sld [smem:[#allocation0]]
  $region61: #{ndnet_forward.3} parent=0
    _
  %s8 = ssub.s32 1, %s6
  %s9 = scalar_select 0, %s8, %s6
  $region1: #{ndnet_forward.3} parent=0
    #allocation2 [shape = 'u8[131072]{0}', space=vmem, size = 0x20000, scoped, tag = 'input window, operand 1']
    #allocation3 [shape = 's32[2]{0}', space=sflag, size = 0x8, scoped, tag = 'scoped memory for ndnet_forward.3']
    #allocation4 [shape = 's32[2]{0}', space=sflag, size = 0x8, scoped, tag = 'scoped memory for ndnet_forward.3']
    #allocation5 [shape = 'u8[65536]{0}', space=vmem, size = 0x10000, scoped, tag = 'input window, operand 2, single buffered']
    #allocation6 [shape = 's32[1]{0}', space=sflag, size = 0x4, scoped, tag = 'scoped memory for ndnet_forward.3']
    #allocation7 [shape = 'u8[131072]{0}', space=vmem, size = 0x20000, scoped, tag = 'output window, operand 0']
    %10 = vsyncpa [#allocation3], 0
    %s11 = scalar_lea.sflag [#allocation3], 1
    %12 = vsyncpa %s11, 0
    %13 = vsyncpa [#allocation6], 0
    %14 = vsyncpa [#allocation4], 0
    %s15 = scalar_lea.sflag [#allocation4], 1
    %16 = vsyncpa %s15, 0
    loop: start=0, step=1, limit=4
    $region2: #{ndnet_forward.3} parent=1 // loop_pre_header
      _
    $region3: #{ndnet_forward.3} parent=1 // loop_header
      %s18 = sphi 0, %s22
      %p19 = scmp.ge.s32.totalorder %s18, 4
      %s25 = sphi 0, %s37
      %s26 = sphi 0, %s33
      %s27 = sphi 0, %s25
      %s28 = sphi 0, %s26
      %s29 = sphi 0, %s27
      %s30 = sphi 0, %s28
      %s42 = sphi 0, %s44
      %s45 = sphi 0, %s42
      %s46 = sphi 0, %s45
      %s62 = sphi 0, %s46
      %s70 = sphi 0, %s72
      %s73 = sphi 0, %s70
      %s74 = sphi 0, %s73
      %s90 = sphi 0, %s74
      %s94 = sphi 0, %s94
      %s96 = sphi 0, %s94
      %s97 = sphi 0, %s96
      %s111 = sphi 0, %s97
      %s115 = sphi 0, %s115
      %s117 = sphi 0, %s115
      %s118 = sphi 0, %s117
      %s132 = sphi 0, %s118
      %s136 = sphi 0, %s136
      %s138 = sphi 0, %s136
      %s139 = sphi 0, %s138
      %s153 = sphi 0, %s139
      %s161 = sphi 0, %s163
      %s164 = sphi 0, %s161
      %s165 = sphi 0, %s164
      %s181 = sphi 0, %s165
    $region4: #{ndnet_forward.3} parent=1 // loop_header_branch
      %21 = sbr.rel (%p19) target = $region8
    $region5: #{ndnet_forward.3} parent=1 // loop_body
      %s23 = ssub.s32 %s18, 1
      %s24 = ssub.s32 %s18, 2
      %s31 = sadd.s32 1, %s26
      %p32 = scmp.ge.s32.totalorder %s31, 1
      %s33 = scalar_select %p32, 0, %s31
      %s34 = sadd.s32 1, %s25
      %s35 = scalar_select %p32, %s34, %s25
      %p36 = scmp.ge.s32.totalorder %s35, 2
      %s37 = scalar_select %p36, 0, %s35
      %s38 = ssub.s32 %s25, %s37
      %s39 = ssub.s32 %s26, %s33
      %s40 = sor.u32 %s38, %s39
      %p41 = scmp.eq.s32.totalorder %s40, 0
      %s43 = sadd.s32 %s42, 1
      %s44 = scalar_select %p41, %s42, %s43
      %p47 = pneg %p41
      %p48 = scmp.eq.s32.totalorder %s18, 1
      %p49 = por %p47, %p48
      %p50 = scmp.ne.s32.totalorder %s42, %s45
      %p51 = scmp.eq.s32.totalorder %s18, 0
      %p52 = por %p50, %p51
      %p53 = scmp.ne.s32.totalorder %s42, %s45
      %p54 = scmp.eq.s32.totalorder %s23, 1
      %p55 = por %p53, %p54
      %p56 = scmp.ne.s32.totalorder %s45, %s46
      %p57 = scmp.eq.s32.totalorder %s23, 0
      %p58 = por %p56, %p57
      %p59 = scmp.ne.s32.totalorder %s45, %s46
      %p60 = scmp.eq.s32.totalorder %s24, 1
      %p61 = por %p59, %p60
      %p63 = scmp.ne.s32.totalorder %s46, %s62
      %p64 = scmp.eq.s32.totalorder %s24, 0
      %p65 = por %p63, %p64
      %s66 = ssub.s32 %s25, %s37
      %s67 = ssub.s32 %s26, %s33
      %s68 = sor.u32 %s66, %s67
      %p69 = scmp.eq.s32.totalorder %s68, 0
      %s71 = sadd.s32 %s70, 1
      %s72 = scalar_select %p69, %s70, %s71
      %p75 = pneg %p69
      %p76 = scmp.eq.s32.totalorder %s18, 1
      %p77 = por %p75, %p76
      %p78 = scmp.ne.s32.totalorder %s70, %s73
      %p79 = scmp.eq.s32.totalorder %s18, 0
      %p80 = por %p78, %p79
      %p81 = scmp.ne.s32.totalorder %s70, %s73
      %p82 = scmp.eq.s32.totalorder %s23, 1
      %p83 = por %p81, %p82
      %p84 = scmp.ne.s32.totalorder %s73, %s74
      %p85 = scmp.eq.s32.totalorder %s23, 0
      %p86 = por %p84, %p85
      %p87 = scmp.ne.s32.totalorder %s73, %s74
      %p88 = scmp.eq.s32.totalorder %s24, 1
      %p89 = por %p87, %p88
      %p91 = scmp.ne.s32.totalorder %s74, %s90
      %p92 = scmp.eq.s32.totalorder %s24, 0
      %p93 = por %p91, %p92
      %s95 = sadd.s32 %s94, 1
      %p98 = scmp.eq.s32.totalorder %s18, 1
      %p99 = scmp.ne.s32.totalorder %s94, %s96
      %p100 = scmp.eq.s32.totalorder %s18, 0
      %p101 = por %p99, %p100
      %p102 = scmp.ne.s32.totalorder %s94, %s96
      %p103 = scmp.eq.s32.totalorder %s23, 1
      %p104 = por %p102, %p103
      %p105 = scmp.ne.s32.totalorder %s96, %s97
      %p106 = scmp.eq.s32.totalorder %s23, 0
      %p107 = por %p105, %p106
      %p108 = scmp.ne.s32.totalorder %s96, %s97
      %p109 = scmp.eq.s32.totalorder %s24, 1
      %p110 = por %p108, %p109
      %p112 = scmp.ne.s32.totalorder %s97, %s111
      %p113 = scmp.eq.s32.totalorder %s24, 0
      %p114 = por %p112, %p113
      %s116 = sadd.s32 %s115, 1
      %p119 = scmp.eq.s32.totalorder %s18, 1
      %p120 = scmp.ne.s32.totalorder %s115, %s117
      %p121 = scmp.eq.s32.totalorder %s18, 0
      %p122 = por %p120, %p121
      %p123 = scmp.ne.s32.totalorder %s115, %s117
      %p124 = scmp.eq.s32.totalorder %s23, 1
      %p125 = por %p123, %p124
      %p126 = scmp.ne.s32.totalorder %s117, %s118
      %p127 = scmp.eq.s32.totalorder %s23, 0
      %p128 = por %p126, %p127
      %p129 = scmp.ne.s32.totalorder %s117, %s118
      %p130 = scmp.eq.s32.totalorder %s24, 1
      %p131 = por %p129, %p130
      %p133 = scmp.ne.s32.totalorder %s118, %s132
      %p134 = scmp.eq.s32.totalorder %s24, 0
      %p135 = por %p133, %p134
      %s137 = sadd.s32 %s136, 1
      %p140 = scmp.eq.s32.totalorder %s18, 1
      %p141 = scmp.ne.s32.totalorder %s136, %s138
      %p142 = scmp.eq.s32.totalorder %s18, 0
      %p143 = por %p141, %p142
      %p144 = scmp.ne.s32.totalorder %s136, %s138
      %p145 = scmp.eq.s32.totalorder %s23, 1
      %p146 = por %p144, %p145
      %p147 = scmp.ne.s32.totalorder %s138, %s139
      %p148 = scmp.eq.s32.totalorder %s23, 0
      %p149 = por %p147, %p148
      %p150 = scmp.ne.s32.totalorder %s138, %s139
      %p151 = scmp.eq.s32.totalorder %s24, 1
      %p152 = por %p150, %p151
      %p154 = scmp.ne.s32.totalorder %s139, %s153
      %p155 = scmp.eq.s32.totalorder %s24, 0
      %p156 = por %p154, %p155
      %s157 = ssub.s32 %s25, %s37
      %s158 = ssub.s32 %s26, %s33
      %s159 = sor.u32 %s157, %s158
      %p160 = scmp.eq.s32.totalorder %s159, 0
      %s162 = sadd.s32 %s161, 1
      %s163 = scalar_select %p160, %s161, %s162
      %p166 = pneg %p160
      %p167 = scmp.eq.s32.totalorder %s18, 1
      %p168 = por %p166, %p167
      %p169 = scmp.ne.s32.totalorder %s161, %s164
      %p170 = scmp.eq.s32.totalorder %s18, 0
      %p171 = por %p169, %p170
      %p172 = scmp.ne.s32.totalorder %s161, %s164
      %p173 = scmp.eq.s32.totalorder %s23, 1
      %p174 = por %p172, %p173
      %p175 = scmp.ne.s32.totalorder %s164, %s165
      %p176 = scmp.eq.s32.totalorder %s23, 0
      %p177 = por %p175, %p176
      %p178 = scmp.ne.s32.totalorder %s164, %s165
      %p179 = scmp.eq.s32.totalorder %s24, 1
      %p180 = por %p178, %p179
      %p182 = scmp.ne.s32.totalorder %s165, %s181
      %p183 = scmp.eq.s32.totalorder %s24, 0
      %p184 = por %p182, %p183
      %p185 = scmp.le.s32.totalorder 1, %s18
      %p186 = scmp.lt.s32.totalorder %s18, 3
      %p187 = pnand %p185, %p186
      %p188 = pneg %p187
      // Predicated region
      $region9: #{ndnet_forward.3} parent=5 // pred_check
        _
      $region10: #{ndnet_forward.3} parent=5 // pred_check_branch
        %190 = sbr.rel (%p187) target = $region12
      $region11: #{ndnet_forward.3} parent=5 // pred_region
        %s191 = ssub.s32 %s18, 1
        // Predicated region
        $region13: #{ndnet_forward.3} parent=11 // pred_check
          %p192 = pneg %p107
        $region14: #{ndnet_forward.3} parent=11 // pred_check_branch
          %194 = sbr.rel (%p192) target = $region16
        $region15: #{ndnet_forward.3} parent=11 // pred_region
          %196 = vsyncadd [#allocation6], 0
          %s197 = sshll.u32 %s2, 4
          %s198 = int_to_ptr.hbm [resolvable:$true] %s197
          %s199 = sshll.u32 [#allocation5], 4
          %s200 = int_to_ptr.vmem [resolvable:$true] %s199
          %205 = dma.hbm_to_vmem [thread:$0]  %s198, 2048, %s200, [#allocation6], 128, 128, 8
        $region16: #{ndnet_forward.3} parent=11 // pred_fallthru
          _
        // Predicated region
        $region17: #{ndnet_forward.3} parent=11 // pred_check
          %p206 = pneg %p128
        $region18: #{ndnet_forward.3} parent=11 // pred_check_branch
          %208 = sbr.rel (%p206) target = $region20
        $region19: #{ndnet_forward.3} parent=11 // pred_region
          _
        $region20: #{ndnet_forward.3} parent=11 // pred_fallthru
          _
        // Predicated region
        $region21: #{ndnet_forward.3} parent=11 // pred_check
          %p209 = pneg %p149
        $region22: #{ndnet_forward.3} parent=11 // pred_check_branch
          %211 = sbr.rel (%p209) target = $region24
        $region23: #{ndnet_forward.3} parent=11 // pred_region
          _
        $region24: #{ndnet_forward.3} parent=11 // pred_fallthru
          _
      $region12: #{ndnet_forward.3} parent=5 // pred_fallthru
        _
      %p212 = scmp.lt.s32.totalorder %s18, 2
      // Predicated region
      $region25: #{ndnet_forward.3} parent=5 // pred_check
        %p213 = pneg %p212
      $region26: #{ndnet_forward.3} parent=5 // pred_check_branch
        %215 = sbr.rel (%p213) target = $region28
      $region27: #{ndnet_forward.3} parent=5 // pred_region
        // Predicated region
        $region29: #{ndnet_forward.3} parent=27 // pred_check
          %p216 = pneg %p52
        $region30: #{ndnet_forward.3} parent=27 // pred_check_branch
          %218 = sbr.rel (%p216) target = $region32
        $region31: #{ndnet_forward.3} parent=27 // pred_region
          %p219 = scmp.lt.s32.totalorder %s25, 1
          %s220 = scalar_select %p219, %s25, 1
          %p221 = scmp.lt.s32.totalorder %s26, 0
          %s222 = scalar_select %p221, %s26, 0
          %s223 = smul.addr %s220, 16
          %s224 = sadd.s32 %s222, %s223
          %s225 = smul.addr %s224, 8
          %s226 = scalar_lea.vmem %s0, %s225
        $region32: #{ndnet_forward.3} parent=27 // pred_fallthru
          _
        // Predicated region
        $region33: #{ndnet_forward.3} parent=27 // pred_check
          %p227 = pneg %p80
        $region34: #{ndnet_forward.3} parent=27 // pred_check_branch
          %229 = sbr.rel (%p227) target = $region36
        $region35: #{ndnet_forward.3} parent=27 // pred_region
          %s230 = sand.u32 %s70, 1
          %s231 = scalar_lea.sflag [#allocation3], %s230
          %s232 = sand.u32 %s70, 1
          %s233 = smul.addr %s232, 128
          %s234 = scalar_lea.vmem [#allocation2], %s233
          %236 = vsyncadd %s231, 0
          %s237 = smul.addr %s25, 16
          %s238 = sadd.s32 %s26, %s237
          %s239 = smul.addr %s238, 8
          %s240 = scalar_lea.hbm %s1, %s239
          %s241 = sshll.u32 %s240, 4
          %s242 = int_to_ptr.hbm [resolvable:$true] %s241
          %s243 = sshll.u32 %s234, 4
          %s244 = int_to_ptr.vmem [resolvable:$true] %s243
          %249 = dma.hbm_to_vmem [thread:$0]  %s242, 2048, %s244, %s231, 128, 128, 8
        $region36: #{ndnet_forward.3} parent=27 // pred_fallthru
          _
      $region28: #{ndnet_forward.3} parent=5 // pred_fallthru
        _
      %p250 = scmp.le.s32.totalorder 1, %s18
      %p251 = scmp.lt.s32.totalorder %s18, 3
      %p252 = pnand %p250, %p251
      %p253 = pneg %p252
      // Predicated region
      $region37: #{ndnet_forward.3} parent=5 // pred_check
        _
      $region38: #{ndnet_forward.3} parent=5 // pred_check_branch
        %255 = sbr.rel (%p252) target = $region40
      $region39: #{ndnet_forward.3} parent=5 // pred_region
        %s256 = ssub.s32 %s18, 1
        %s257 = sand.u32 %s73, 1
        %s258 = scalar_lea.sflag [#allocation3], %s257
        %s259 = sand.u32 %s73, 1
        %s260 = smul.addr %s259, 128
        %s261 = scalar_lea.vmem [#allocation2], %s260
        // Predicated region
        $region41: #{ndnet_forward.3} parent=39 // pred_check
          %p262 = pneg %p86
        $region42: #{ndnet_forward.3} parent=39 // pred_check_branch
          %264 = sbr.rel (%p262) target = $region44
        $region43: #{ndnet_forward.3} parent=39 // pred_region
          %266 = dma.done %s258, 2048
        $region44: #{ndnet_forward.3} parent=39 // pred_fallthru
          _
        // Predicated region
        $region45: #{ndnet_forward.3} parent=39 // pred_check
          %p267 = pneg %p107
        $region46: #{ndnet_forward.3} parent=39 // pred_check_branch
          %269 = sbr.rel (%p267) target = $region48
        $region47: #{ndnet_forward.3} parent=39 // pred_region
          %271 = dma.done [#allocation6], 2048
        $region48: #{ndnet_forward.3} parent=39 // pred_fallthru
          _
        %p272 = scmp.lt.s32.totalorder %s27, 1
        %s273 = scalar_select %p272, %s27, 1
        %p274 = scmp.lt.s32.totalorder %s28, 0
        %s275 = scalar_select %p274, %s28, 0
        %s276 = smul.addr %s273, 16
        %s277 = sadd.s32 %s275, %s276
        %s278 = smul.addr %s277, 8
        %s279 = scalar_lea.vmem %s0, %s278
        %p280 = pneg %p58
        %p281 = pneg %p55
        %s282 = sand.u32 %s73, 1
        %s283 = scalar_lea.sflag [#allocation3], %s282
        %s284 = sand.u32 %s73, 1
        %s285 = smul.addr %s284, 128
        %s286 = scalar_lea.vmem [#allocation2], %s285
        %p287 = pneg %p86
        %p288 = pneg %p83
        %p289 = pneg %p107
        %p290 = pneg %p104
        %p291 = pneg %p128
        %p292 = pneg %p125
        %p293 = pneg %p149
        %p294 = pneg %p146
        %p295 = pneg %p177
        %p296 = pneg %p174
        %s297 = sand.u32 %s164, 1
        %s298 = scalar_lea.sflag [#allocation4], %s297
        %s299 = sand.u32 %s164, 1
        %s300 = smul.addr %s299, 128
        %s301 = scalar_lea.vmem [#allocation7], %s300
        %p302 = scmp.lt.s32.totalorder %s27, 1
        %s303 = scalar_select %p302, %s27, 1
        %p304 = scmp.lt.s32.totalorder %s28, 0
        %s305 = scalar_select %p304, %s28, 0
        %s306 = smul.addr %s303, 16
        %s307 = sadd.s32 %s305, %s306
        %s308 = smul.addr %s307, 8
        %s309 = scalar_lea.vmem %s0, %s308
        %v310 = vld [vmem:[%s309] sm:$0xff]
        %v311 = vld [vmem:[%s309 + $0x8] sm:$0xff]
        %v312 = vld [vmem:[%s309 + $0x10] sm:$0xff]
        %v313 = vld [vmem:[%s309 + $0x18] sm:$0xff]
        %v314 = vld [vmem:[%s309 + $0x20] sm:$0xff]
        %v315 = vld [vmem:[%s309 + $0x28] sm:$0xff]
        %v316 = vld [vmem:[%s309 + $0x30] sm:$0xff]
        %v317 = vld [vmem:[%s309 + $0x38] sm:$0xff]
        %v318 = vld [vmem:[%s309 + $0x40] sm:$0xff]
        %v319 = vld [vmem:[%s309 + $0x48] sm:$0xff]
        %v320 = vld [vmem:[%s309 + $0x50] sm:$0xff]
        %v321 = vld [vmem:[%s309 + $0x58] sm:$0xff]
        %v322 = vld [vmem:[%s309 + $0x60] sm:$0xff]
        %v323 = vld [vmem:[%s309 + $0x68] sm:$0xff]
        %v324 = vld [vmem:[%s309 + $0x70] sm:$0xff]
        %v325 = vld [vmem:[%s309 + $0x78] sm:$0xff]
        %v326 = vld [vmem:[%s261] sm:$0xff]
        %v327 = vld [vmem:[%s261 + $0x8] sm:$0xff]
        %v328 = vld [vmem:[%s261 + $0x10] sm:$0xff]
        %v329 = vld [vmem:[%s261 + $0x18] sm:$0xff]
        %v330 = vld [vmem:[%s261 + $0x20] sm:$0xff]
        %v331 = vld [vmem:[%s261 + $0x28] sm:$0xff]
        %v332 = vld [vmem:[%s261 + $0x30] sm:$0xff]
        %v333 = vld [vmem:[%s261 + $0x38] sm:$0xff]
        %v334 = vld [vmem:[%s261 + $0x40] sm:$0xff]
        %v335 = vld [vmem:[%s261 + $0x48] sm:$0xff]
        %v336 = vld [vmem:[%s261 + $0x50] sm:$0xff]
        %v337 = vld [vmem:[%s261 + $0x58] sm:$0xff]
        %v338 = vld [vmem:[%s261 + $0x60] sm:$0xff]
        %v339 = vld [vmem:[%s261 + $0x68] sm:$0xff]
        %v340 = vld [vmem:[%s261 + $0x70] sm:$0xff]
        %v341 = vld [vmem:[%s261 + $0x78] sm:$0xff]
        %v342 = vadd.f32 %v310, %v326
        %v343 = vadd.f32 %v311, %v327
        %v344 = vadd.f32 %v312, %v328
        %v345 = vadd.f32 %v313, %v329
        %v346 = vadd.f32 %v314, %v330
        %v347 = vadd.f32 %v315, %v331
        %v348 = vadd.f32 %v316, %v332
        %v349 = vadd.f32 %v317, %v333
        %v350 = vadd.f32 %v318, %v334
        %v351 = vadd.f32 %v319, %v335
        %v352 = vadd.f32 %v320, %v336
        %v353 = vadd.f32 %v321, %v337
        %v354 = vadd.f32 %v322, %v338
        %v355 = vadd.f32 %v323, %v339
        %v356 = vadd.f32 %v324, %v340
        %v357 = vadd.f32 %v325, %v341
        %v358 = vld [vmem:[#allocation5] sm:$0xff]
        %v359 = vld [vmem:[#allocation5 + $0x8] sm:$0xff]
        %v360 = vld [vmem:[#allocation5 + $0x10] sm:$0xff]
        %v361 = vld [vmem:[#allocation5 + $0x18] sm:$0xff]
        %v362 = vld [vmem:[#allocation5 + $0x20] sm:$0xff]
        %v363 = vld [vmem:[#allocation5 + $0x28] sm:$0xff]
        %v364 = vld [vmem:[#allocation5 + $0x30] sm:$0xff]
        %v365 = vld [vmem:[#allocation5 + $0x38] sm:$0xff]
        %v366 = vld [vmem:[#allocation5 + $0x40] sm:$0xff]
        %v367 = vld [vmem:[#allocation5 + $0x48] sm:$0xff]
        %v368 = vld [vmem:[#allocation5 + $0x50] sm:$0xff]
        %v369 = vld [vmem:[#allocation5 + $0x58] sm:$0xff]
        %v370 = vld [vmem:[#allocation5 + $0x60] sm:$0xff]
        %v371 = vld [vmem:[#allocation5 + $0x68] sm:$0xff]
        %v372 = vld [vmem:[#allocation5 + $0x70] sm:$0xff]
        %v373 = vld [vmem:[#allocation5 + $0x78] sm:$0xff]
        %374 = vmatpush.msra.mxu0 %v357
        %375 = vmatpush.msra.mxu0 %v356
        %376 = vmatpush.msra.mxu0 %v355
        %377 = vmatpush.msra.mxu0 %v354
        %378 = vmatpush.msra.mxu0 %v353
        %379 = vmatpush.msra.mxu0 %v352
        %380 = vmatpush.msra.mxu0 %v351
        %381 = vmatpush.msra.mxu0 %v350
        %382 = vmatpush.msra.mxu0 %v349
        %383 = vmatpush.msra.mxu0 %v348
        %384 = vmatpush.msra.mxu0 %v347
        %385 = vmatpush.msra.mxu0 %v346
        %386 = vmatpush.msra.mxu0 %v345
        %387 = vmatpush.msra.mxu0 %v344
        %388 = vmatpush.msra.mxu0 %v343
        %389 = vmatpush.msra.mxu0 %v342
        %390 = vmatmul.f32.gmra.mxu0 %v358
        %v391 = vpop.f32.mrf.mxu0
        %v392 = vadd.f32 0.0, %v391
        %393 = vmatmul.f32.gmra.mxu0 %v359
        %v394 = vpop.f32.mrf.mxu0
        %v395 = vadd.f32 0.0, %v394
        %396 = vmatmul.f32.gmra.mxu0 %v360
        %v397 = vpop.f32.mrf.mxu0
        %v398 = vadd.f32 0.0, %v397
        %399 = vmatmul.f32.gmra.mxu0 %v361
        %v400 = vpop.f32.mrf.mxu0
        %v401 = vadd.f32 0.0, %v400
        %402 = vmatmul.f32.gmra.mxu0 %v362
        %v403 = vpop.f32.mrf.mxu0
        %v404 = vadd.f32 0.0, %v403
        %405 = vmatmul.f32.gmra.mxu0 %v363
        %v406 = vpop.f32.mrf.mxu0
        %v407 = vadd.f32 0.0, %v406
        %408 = vmatmul.f32.gmra.mxu0 %v364
        %v409 = vpop.f32.mrf.mxu0
        %v410 = vadd.f32 0.0, %v409
        %411 = vmatmul.f32.gmra.mxu0 %v365
        %v412 = vpop.f32.mrf.mxu0
        %v413 = vadd.f32 0.0, %v412
        %414 = vmatmul.f32.gmra.mxu0 %v366
        %v415 = vpop.f32.mrf.mxu0
        %v416 = vadd.f32 0.0, %v415
        %417 = vmatmul.f32.gmra.mxu0 %v367
        %v418 = vpop.f32.mrf.mxu0
        %v419 = vadd.f32 0.0, %v418
        %420 = vmatmul.f32.gmra.mxu0 %v368
        %v421 = vpop.f32.mrf.mxu0
        %v422 = vadd.f32 0.0, %v421
        %423 = vmatmul.f32.gmra.mxu0 %v369
        %v424 = vpop.f32.mrf.mxu0
        %v425 = vadd.f32 0.0, %v424
        %426 = vmatmul.f32.gmra.mxu0 %v370
        %v427 = vpop.f32.mrf.mxu0
        %v428 = vadd.f32 0.0, %v427
        %429 = vmatmul.f32.gmra.mxu0 %v371
        %v430 = vpop.f32.mrf.mxu0
        %v431 = vadd.f32 0.0, %v430
        %432 = vmatmul.f32.gmra.mxu0 %v372
        %v433 = vpop.f32.mrf.mxu0
        %v434 = vadd.f32 0.0, %v433
        %435 = vmatmul.f32.gmra.mxu0 %v373
        %v436 = vpop.f32.mrf.mxu0
        %v437 = vadd.f32 0.0, %v436
        %438 = vdwg.mxu0
        %v439 = vld [vmem:[%s3] sm:$0xff]
        %v440 = vld [vmem:[%s3 + $0x8] sm:$0xff]
        %v441 = vld [vmem:[%s3 + $0x10] sm:$0xff]
        %v442 = vld [vmem:[%s3 + $0x18] sm:$0xff]
        %v443 = vld [vmem:[%s3 + $0x20] sm:$0xff]
        %v444 = vld [vmem:[%s3 + $0x28] sm:$0xff]
        %v445 = vld [vmem:[%s3 + $0x30] sm:$0xff]
        %v446 = vld [vmem:[%s3 + $0x38] sm:$0xff]
        %v447 = vld [vmem:[%s3 + $0x40] sm:$0xff]
        %v448 = vld [vmem:[%s3 + $0x48] sm:$0xff]
        %v449 = vld [vmem:[%s3 + $0x50] sm:$0xff]
        %v450 = vld [vmem:[%s3 + $0x58] sm:$0xff]
        %v451 = vld [vmem:[%s3 + $0x60] sm:$0xff]
        %v452 = vld [vmem:[%s3 + $0x68] sm:$0xff]
        %v453 = vld [vmem:[%s3 + $0x70] sm:$0xff]
        %v454 = vld [vmem:[%s3 + $0x78] sm:$0xff]
        %456 = vset.pattern.permute.xlu0 0
        %457 = vperm.xlu0 %456, %v439
        %v458 = vpop.permute.xlu0 %457
        %461 = vset.pattern.permute.xlu0 0
        %462 = vperm.xlu0 %461, %v440
        %v463 = vpop.permute.xlu0 %462
        %466 = vset.pattern.permute.xlu0 0
        %467 = vperm.xlu0 %466, %v441
        %v468 = vpop.permute.xlu0 %467
        %471 = vset.pattern.permute.xlu0 0
        %472 = vperm.xlu0 %471, %v442
        %v473 = vpop.permute.xlu0 %472
        %476 = vset.pattern.permute.xlu0 0
        %477 = vperm.xlu0 %476, %v443
        %v478 = vpop.permute.xlu0 %477
        %481 = vset.pattern.permute.xlu0 0
        %482 = vperm.xlu0 %481, %v444
        %v483 = vpop.permute.xlu0 %482
        %486 = vset.pattern.permute.xlu0 0
        %487 = vperm.xlu0 %486, %v445
        %v488 = vpop.permute.xlu0 %487
        %491 = vset.pattern.permute.xlu0 0
        %492 = vperm.xlu0 %491, %v446
        %v493 = vpop.permute.xlu0 %492
        %496 = vset.pattern.permute.xlu0 0
        %497 = vperm.xlu0 %496, %v447
        %v498 = vpop.permute.xlu0 %497
        %501 = vset.pattern.permute.xlu0 0
        %502 = vperm.xlu0 %501, %v448
        %v503 = vpop.permute.xlu0 %502
        %506 = vset.pattern.permute.xlu0 0
        %507 = vperm.xlu0 %506, %v449
        %v508 = vpop.permute.xlu0 %507
        %511 = vset.pattern.permute.xlu0 0
        %512 = vperm.xlu0 %511, %v450
        %v513 = vpop.permute.xlu0 %512
        %516 = vset.pattern.permute.xlu0 0
        %517 = vperm.xlu0 %516, %v451
        %v518 = vpop.permute.xlu0 %517
        %521 = vset.pattern.permute.xlu0 0
        %522 = vperm.xlu0 %521, %v452
        %v523 = vpop.permute.xlu0 %522
        %526 = vset.pattern.permute.xlu0 0
        %527 = vperm.xlu0 %526, %v453
        %v528 = vpop.permute.xlu0 %527
        %531 = vset.pattern.permute.xlu0 0
        %532 = vperm.xlu0 %531, %v454
        %v533 = vpop.permute.xlu0 %532
        %v535 = vmul.f32 %v392, %v458
        %v536 = vmul.f32 %v395, %v463
        %v537 = vmul.f32 %v398, %v468
        %v538 = vmul.f32 %v401, %v473
        %v539 = vmul.f32 %v404, %v478
        %v540 = vmul.f32 %v407, %v483
        %v541 = vmul.f32 %v410, %v488
        %v542 = vmul.f32 %v413, %v493
        %v543 = vmul.f32 %v416, %v498
        %v544 = vmul.f32 %v419, %v503
        %v545 = vmul.f32 %v422, %v508
        %v546 = vmul.f32 %v425, %v513
        %v547 = vmul.f32 %v428, %v518
        %v548 = vmul.f32 %v431, %v523
        %v549 = vmul.f32 %v434, %v528
        %v550 = vmul.f32 %v437, %v533
        %v551 = vld [vmem:[%s4] sm:$0xff]
        %v552 = vld [vmem:[%s4 + $0x8] sm:$0xff]
        %v553 = vld [vmem:[%s4 + $0x10] sm:$0xff]
        %v554 = vld [vmem:[%s4 + $0x18] sm:$0xff]
        %v555 = vld [vmem:[%s4 + $0x20] sm:$0xff]
        %v556 = vld [vmem:[%s4 + $0x28] sm:$0xff]
        %v557 = vld [vmem:[%s4 + $0x30] sm:$0xff]
        %v558 = vld [vmem:[%s4 + $0x38] sm:$0xff]
        %v559 = vld [vmem:[%s4 + $0x40] sm:$0xff]
        %v560 = vld [vmem:[%s4 + $0x48] sm:$0xff]
        %v561 = vld [vmem:[%s4 + $0x50] sm:$0xff]
        %v562 = vld [vmem:[%s4 + $0x58] sm:$0xff]
        %v563 = vld [vmem:[%s4 + $0x60] sm:$0xff]
        %v564 = vld [vmem:[%s4 + $0x68] sm:$0xff]
        %v565 = vld [vmem:[%s4 + $0x70] sm:$0xff]
        %v566 = vld [vmem:[%s4 + $0x78] sm:$0xff]
        %568 = vset.pattern.permute.xlu0 0
        %569 = vperm.xlu0 %568, %v551
        %v570 = vpop.permute.xlu0 %569
        %573 = vset.pattern.permute.xlu0 0
        %574 = vperm.xlu0 %573, %v552
        %v575 = vpop.permute.xlu0 %574
        %578 = vset.pattern.permute.xlu0 0
        %579 = vperm.xlu0 %578, %v553
        %v580 = vpop.permute.xlu0 %579
        %583 = vset.pattern.permute.xlu0 0
        %584 = vperm.xlu0 %583, %v554
        %v585 = vpop.permute.xlu0 %584
        %588 = vset.pattern.permute.xlu0 0
        %589 = vperm.xlu0 %588, %v555
        %v590 = vpop.permute.xlu0 %589
        %593 = vset.pattern.permute.xlu0 0
        %594 = vperm.xlu0 %593, %v556
        %v595 = vpop.permute.xlu0 %594
        %598 = vset.pattern.permute.xlu0 0
        %599 = vperm.xlu0 %598, %v557
        %v600 = vpop.permute.xlu0 %599
        %603 = vset.pattern.permute.xlu0 0
        %604 = vperm.xlu0 %603, %v558
        %v605 = vpop.permute.xlu0 %604
        %608 = vset.pattern.permute.xlu0 0
        %609 = vperm.xlu0 %608, %v559
        %v610 = vpop.permute.xlu0 %609
        %613 = vset.pattern.permute.xlu0 0
        %614 = vperm.xlu0 %613, %v560
        %v615 = vpop.permute.xlu0 %614
        %618 = vset.pattern.permute.xlu0 0
        %619 = vperm.xlu0 %618, %v561
        %v620 = vpop.permute.xlu0 %619
        %623 = vset.pattern.permute.xlu0 0
        %624 = vperm.xlu0 %623, %v562
        %v625 = vpop.permute.xlu0 %624
        %628 = vset.pattern.permute.xlu0 0
        %629 = vperm.xlu0 %628, %v563
        %v630 = vpop.permute.xlu0 %629
        %633 = vset.pattern.permute.xlu0 0
        %634 = vperm.xlu0 %633, %v564
        %v635 = vpop.permute.xlu0 %634
        %638 = vset.pattern.permute.xlu0 0
        %639 = vperm.xlu0 %638, %v565
        %v640 = vpop.permute.xlu0 %639
        %643 = vset.pattern.permute.xlu0 0
        %644 = vperm.xlu0 %643, %v566
        %v645 = vpop.permute.xlu0 %644
        %v647 = vadd.f32 %v535, %v570
        %v648 = vadd.f32 %v536, %v575
        %v649 = vadd.f32 %v537, %v580
        %v650 = vadd.f32 %v538, %v585
        %v651 = vadd.f32 %v539, %v590
        %v652 = vadd.f32 %v540, %v595
        %v653 = vadd.f32 %v541, %v600
        %v654 = vadd.f32 %v542, %v605
        %v655 = vadd.f32 %v543, %v610
        %v656 = vadd.f32 %v544, %v615
        %v657 = vadd.f32 %v545, %v620
        %v658 = vadd.f32 %v546, %v625
        %v659 = vadd.f32 %v547, %v630
        %v660 = vadd.f32 %v548, %v635
        %v661 = vadd.f32 %v549, %v640
        %v662 = vadd.f32 %v550, %v645
        %663 = vst [vmem:[%s301] sm:$0xff] %v647
        %664 = vst [vmem:[%s301 + $0x8] sm:$0xff] %v648
        %665 = vst [vmem:[%s301 + $0x10] sm:$0xff] %v649
        %666 = vst [vmem:[%s301 + $0x18] sm:$0xff] %v650
        %667 = vst [vmem:[%s301 + $0x20] sm:$0xff] %v651
        %668 = vst [vmem:[%s301 + $0x28] sm:$0xff] %v652
        %669 = vst [vmem:[%s301 + $0x30] sm:$0xff] %v653
        %670 = vst [vmem:[%s301 + $0x38] sm:$0xff] %v654
        %671 = vst [vmem:[%s301 + $0x40] sm:$0xff] %v655
        %672 = vst [vmem:[%s301 + $0x48] sm:$0xff] %v656
        %673 = vst [vmem:[%s301 + $0x50] sm:$0xff] %v657
        %674 = vst [vmem:[%s301 + $0x58] sm:$0xff] %v658
        %675 = vst [vmem:[%s301 + $0x60] sm:$0xff] %v659
        %676 = vst [vmem:[%s301 + $0x68] sm:$0xff] %v660
        %677 = vst [vmem:[%s301 + $0x70] sm:$0xff] %v661
        %678 = vst [vmem:[%s301 + $0x78] sm:$0xff] %v662
        %s679 = sand.u32 %s164, 1
        %s680 = scalar_lea.sflag [#allocation4], %s679
        %s681 = sand.u32 %s164, 1
        %s682 = smul.addr %s681, 128
        %s683 = scalar_lea.vmem [#allocation7], %s682
        // Predicated region
        $region49: #{ndnet_forward.3} parent=39 // pred_check
          %p684 = pneg %p174
        $region50: #{ndnet_forward.3} parent=39 // pred_check_branch
          %686 = sbr.rel (%p684) target = $region52
        $region51: #{ndnet_forward.3} parent=39 // pred_region
          %688 = vsyncadd %s680, 0
          %s689 = smul.addr %s27, 16
          %s690 = sadd.s32 %s28, %s689
          %s691 = smul.addr %s690, 8
          %s692 = scalar_lea.hbm %s5, %s691
          %s693 = sshll.u32 %s683, 4
          %s694 = int_to_ptr.vmem [resolvable:$true] %s693
          %s695 = sshll.u32 %s692, 4
          %s696 = int_to_ptr.hbm [resolvable:$true] %s695
          %701 = dma.vmem_to_hbm [thread:$0]  %s694, 2048, %s696, %s680, 128, 128, 8
        $region52: #{ndnet_forward.3} parent=39 // pred_fallthru
          _
      $region40: #{ndnet_forward.3} parent=5 // pred_fallthru
        _
      %p702 = scmp.le.s32.totalorder 2, %s18
      // Predicated region
      $region53: #{ndnet_forward.3} parent=5 // pred_check
        %p703 = pneg %p702
      $region54: #{ndnet_forward.3} parent=5 // pred_check_branch
        %705 = sbr.rel (%p703) target = $region56
      $region55: #{ndnet_forward.3} parent=5 // pred_region
        %s706 = ssub.s32 %s18, 2
        // Predicated region
        $region57: #{ndnet_forward.3} parent=55 // pred_check
          %p707 = pneg %p180
        $region58: #{ndnet_forward.3} parent=55 // pred_check_branch
          %709 = sbr.rel (%p707) target = $region60
        $region59: #{ndnet_forward.3} parent=55 // pred_region
          %s710 = sand.u32 %s165, 1
          %s711 = scalar_lea.sflag [#allocation4], %s710
          %s712 = sand.u32 %s165, 1
          %s713 = smul.addr %s712, 128
          %s714 = scalar_lea.vmem [#allocation7], %s713
          %716 = dma.done %s711, 2048
        $region60: #{ndnet_forward.3} parent=55 // pred_fallthru
          _
      $region56: #{ndnet_forward.3} parent=5 // pred_fallthru
        _
    $region6: #{ndnet_forward.3} parent=1 // loop_footer
      %s22 = sadd.s32 1, %s18
    $region7: #{ndnet_forward.3} parent=1 // loop_footer_branch
      %17 = sbr.rel target = $region3
    $region8: #{ndnet_forward.3} parent=1 // loop_exit
      _
    %717 = vsyncpa [#allocation3], 1
    %s718 = scalar_lea.sflag [#allocation3], 1
    %719 = vsyncpa %s718, 1
    %720 = vsyncpa [#allocation6], 1
    %721 = vsyncpa [#allocation4], 1
    %s722 = scalar_lea.sflag [#allocation4], 1
    %723 = vsyncpa %s722, 1

// kernel: ndnet_forward.2
$region0: #{ndnet_forward.2}
  #allocation0 [shape = 'u32[]', space=smem, size = 0x4, offset = 0x4, fixed_abs, tag = 'smem constant byte address 0x4 - core index']
  #allocation1 [shape = 'u32[72,128]{1,0:T(1,128)}', space=vmem, size = 0x9000, scoped, tag = 'internal scratch']
  #allocation2 [shape = 'f32[256,128]{1,0:T(8,128)}', space=vmem, size = 0x20000, scoped, tag = 'scratch operand']
  %s0 = inlined_call_operand.vmem [shape: f32[256,512], index: 0, kind: input, shape index: {}]
  %s1 = inlined_call_operand.vmem [shape: f32[512,128], index: 1, kind: input, shape index: {}]
  %s2 = inlined_call_operand.vmem [shape: f32[1,128], index: 2, kind: input, shape index: {}]
  %s3 = inlined_call_operand.vmem [shape: f32[1,128], index: 3, kind: input, shape index: {}]
  %s4 = inlined_call_operand.vmem [shape: f32[256,128], index: 4, kind: output, shape index: {}]
  %s5 = sld [smem:[#allocation0]]
  $region80: #{ndnet_forward.2} parent=0
    _
  %s7 = ssub.s32 1, %s5
  %s8 = scalar_select 0, %s7, %s5
  $region1: #{ndnet_forward.2} parent=0
    #allocation3 [shape = 'u8[524288]{0}', space=vmem, size = 0x80000, scoped, tag = 'input window, operand 0']
    loop: start=0, step=1, limit=4
    $region2: #{ndnet_forward.2} parent=1 // loop_pre_header
      _
    $region3: #{ndnet_forward.2} parent=1 // loop_header
      %s10 = sphi 0, %s14
      %p11 = scmp.ge.s32.totalorder %s10, 4
      %s17 = sphi 0, %s29
      %s18 = sphi 0, %s25
      %s19 = sphi 0, %s17
      %s20 = sphi 0, %s18
      %s21 = sphi 0, %s19
      %s22 = sphi 0, %s20
      %s34 = sphi 0, %s36
      %s37 = sphi 0, %s34
      %s38 = sphi 0, %s37
      %s54 = sphi 0, %s38
      %s60 = sphi 0, %s62
      %s63 = sphi 0, %s60
      %s64 = sphi 0, %s63
      %s80 = sphi 0, %s64
      %s84 = sphi 0, %s84
      %s86 = sphi 0, %s84
      %s87 = sphi 0, %s86
      %s101 = sphi 0, %s87
      %s105 = sphi 0, %s105
      %s107 = sphi 0, %s105
      %s108 = sphi 0, %s107
      %s122 = sphi 0, %s108
      %s128 = sphi 0, %s130
      %s131 = sphi 0, %s128
      %s132 = sphi 0, %s131
      %s148 = sphi 0, %s132
    $region4: #{ndnet_forward.2} parent=1 // loop_header_branch
      %13 = sbr.rel (%p11) target = $region8
    $region5: #{ndnet_forward.2} parent=1 // loop_body
      %s15 = ssub.s32 %s10, 1
      %s16 = ssub.s32 %s10, 2
      %s23 = sadd.s32 1, %s18
      %p24 = scmp.ge.s32.totalorder %s23, 2
      %s25 = scalar_select %p24, 0, %s23
      %s26 = sadd.s32 1, %s17
      %s27 = scalar_select %p24, %s26, %s17
      %p28 = scmp.ge.s32.totalorder %s27, 1
      %s29 = scalar_select %p28, 0, %s27
      %s30 = ssub.s32 %s17, %s29
      %s31 = ssub.s32 %s18, %s25
      %s32 = sor.u32 %s30, %s31
      %p33 = scmp.eq.s32.totalorder %s32, 0
      %s35 = sadd.s32 %s34, 1
      %s36 = scalar_select %p33, %s34, %s35
      %p39 = pneg %p33
      %p40 = scmp.eq.s32.totalorder %s10, 1
      %p41 = por %p39, %p40
      %p42 = scmp.ne.s32.totalorder %s34, %s37
      %p43 = scmp.eq.s32.totalorder %s10, 0
      %p44 = por %p42, %p43
      %p45 = scmp.ne.s32.totalorder %s34, %s37
      %p46 = scmp.eq.s32.totalorder %s15, 1
      %p47 = por %p45, %p46
      %p48 = scmp.ne.s32.totalorder %s37, %s38
      %p49 = scmp.eq.s32.totalorder %s15, 0
      %p50 = por %p48, %p49
      %p51 = scmp.ne.s32.totalorder %s37, %s38
      %p52 = scmp.eq.s32.totalorder %s16, 1
      %p53 = por %p51, %p52
      %p55 = scmp.ne.s32.totalorder %s38, %s54
      %p56 = scmp.eq.s32.totalorder %s16, 0
      %p57 = por %p55, %p56
      %s58 = ssub.s32 %s18, %s25
      %p59 = scmp.eq.s32.totalorder %s58, 0
      %s61 = sadd.s32 %s60, 1
      %s62 = scalar_select %p59, %s60, %s61
      %p65 = pneg %p59
      %p66 = scmp.eq.s32.totalorder %s10, 1
      %p67 = por %p65, %p66
      %p68 = scmp.ne.s32.totalorder %s60, %s63
      %p69 = scmp.eq.s32.totalorder %s10, 0
      %p70 = por %p68, %p69
      %p71 = scmp.ne.s32.totalorder %s60, %s63
      %p72 = scmp.eq.s32.totalorder %s15, 1
      %p73 = por %p71, %p72
      %p74 = scmp.ne.s32.totalorder %s63, %s64
      %p75 = scmp.eq.s32.totalorder %s15, 0
      %p76 = por %p74, %p75
      %p77 = scmp.ne.s32.totalorder %s63, %s64
      %p78 = scmp.eq.s32.totalorder %s16, 1
      %p79 = por %p77, %p78
      %p81 = scmp.ne.s32.totalorder %s64, %s80
      %p82 = scmp.eq.s32.totalorder %s16, 0
      %p83 = por %p81, %p82
      %s85 = sadd.s32 %s84, 1
      %p88 = scmp.eq.s32.totalorder %s10, 1
      %p89 = scmp.ne.s32.totalorder %s84, %s86
      %p90 = scmp.eq.s32.totalorder %s10, 0
      %p91 = por %p89, %p90
      %p92 = scmp.ne.s32.totalorder %s84, %s86
      %p93 = scmp.eq.s32.totalorder %s15, 1
      %p94 = por %p92, %p93
      %p95 = scmp.ne.s32.totalorder %s86, %s87
      %p96 = scmp.eq.s32.totalorder %s15, 0
      %p97 = por %p95, %p96
      %p98 = scmp.ne.s32.totalorder %s86, %s87
      %p99 = scmp.eq.s32.totalorder %s16, 1
      %p100 = por %p98, %p99
      %p102 = scmp.ne.s32.totalorder %s87, %s101
      %p103 = scmp.eq.s32.totalorder %s16, 0
      %p104 = por %p102, %p103
      %s106 = sadd.s32 %s105, 1
      %p109 = scmp.eq.s32.totalorder %s10, 1
      %p110 = scmp.ne.s32.totalorder %s105, %s107
      %p111 = scmp.eq.s32.totalorder %s10, 0
      %p112 = por %p110, %p111
      %p113 = scmp.ne.s32.totalorder %s105, %s107
      %p114 = scmp.eq.s32.totalorder %s15, 1
      %p115 = por %p113, %p114
      %p116 = scmp.ne.s32.totalorder %s107, %s108
      %p117 = scmp.eq.s32.totalorder %s15, 0
      %p118 = por %p116, %p117
      %p119 = scmp.ne.s32.totalorder %s107, %s108
      %p120 = scmp.eq.s32.totalorder %s16, 1
      %p121 = por %p119, %p120
      %p123 = scmp.ne.s32.totalorder %s108, %s122
      %p124 = scmp.eq.s32.totalorder %s16, 0
      %p125 = por %p123, %p124
      %s126 = ssub.s32 %s17, %s29
      %p127 = scmp.eq.s32.totalorder %s126, 0
      %s129 = sadd.s32 %s128, 1
      %s130 = scalar_select %p127, %s128, %s129
      %p133 = pneg %p127
      %p134 = scmp.eq.s32.totalorder %s10, 1
      %p135 = por %p133, %p134
      %p136 = scmp.ne.s32.totalorder %s128, %s131
      %p137 = scmp.eq.s32.totalorder %s10, 0
      %p138 = por %p136, %p137
      %p139 = scmp.ne.s32.totalorder %s128, %s131
      %p140 = scmp.eq.s32.totalorder %s15, 1
      %p141 = por %p139, %p140
      %p142 = scmp.ne.s32.totalorder %s131, %s132
      %p143 = scmp.eq.s32.totalorder %s15, 0
      %p144 = por %p142, %p143
      %p145 = scmp.ne.s32.totalorder %s131, %s132
      %p146 = scmp.eq.s32.totalorder %s16, 1
      %p147 = por %p145, %p146
      %p149 = scmp.ne.s32.totalorder %s132, %s148
      %p150 = scmp.eq.s32.totalorder %s16, 0
      %p151 = por %p149, %p150
      %p152 = scmp.le.s32.totalorder 1, %s10
      %p153 = scmp.lt.s32.totalorder %s10, 3
      %p154 = pnand %p152, %p153
      %p155 = pneg %p154
      // Predicated region
      $region9: #{ndnet_forward.2} parent=5 // pred_check
        _
      $region10: #{ndnet_forward.2} parent=5 // pred_check_branch
        %157 = sbr.rel (%p154) target = $region12
      $region11: #{ndnet_forward.2} parent=5 // pred_region
        %s158 = ssub.s32 %s10, 1
        // Predicated region
        $region13: #{ndnet_forward.2} parent=11 // pred_check
          %p159 = pneg %p97
        $region14: #{ndnet_forward.2} parent=11 // pred_check_branch
          %161 = sbr.rel (%p159) target = $region16
        $region15: #{ndnet_forward.2} parent=11 // pred_region
          _
        $region16: #{ndnet_forward.2} parent=11 // pred_fallthru
          _
        // Predicated region
        $region17: #{ndnet_forward.2} parent=11 // pred_check
          %p162 = pneg %p118
        $region18: #{ndnet_forward.2} parent=11 // pred_check_branch
          %164 = sbr.rel (%p162) target = $region20
        $region19: #{ndnet_forward.2} parent=11 // pred_region
          _
        $region20: #{ndnet_forward.2} parent=11 // pred_fallthru
          _
      $region12: #{ndnet_forward.2} parent=5 // pred_fallthru
        _
      %p165 = scmp.lt.s32.totalorder %s10, 2
      // Predicated region
      $region21: #{ndnet_forward.2} parent=5 // pred_check
        %p166 = pneg %p165
      $region22: #{ndnet_forward.2} parent=5 // pred_check_branch
        %168 = sbr.rel (%p166) target = $region24
      $region23: #{ndnet_forward.2} parent=5 // pred_region
        // Predicated region
        $region25: #{ndnet_forward.2} parent=23 // pred_check
          %p169 = pneg %p44
        $region26: #{ndnet_forward.2} parent=23 // pred_check_branch
          %171 = sbr.rel (%p169) target = $region28
        $region27: #{ndnet_forward.2} parent=23 // pred_region
          %s172 = sand.u32 %s34, 1
          %s173 = sand.u32 %s34, 1
          %s174 = smul.addr %s173, 512
          %s175 = scalar_lea.vmem [#allocation3], %s174
          %s176 = smul.u32 32, %s17
          %s177 = smul.u32 2, %s18
          %s178 = smul.addr %s176, 4
          %s179 = sadd.s32 %s177, %s178
          %s180 = smul.addr %s179, 8
          %s181 = scalar_lea.vmem %s0, %s180
          // Predicated region
          $region29: #{ndnet_forward.2} parent=27 // pred_check
            _
          $region30: #{ndnet_forward.2} parent=27 // pred_check_branch
            %183 = sbr.rel (0) target = $region32
          $region31: #{ndnet_forward.2} parent=27 // pred_region
            // Predicated region
            $region33: #{ndnet_forward.2} parent=31 // pred_check
              _
            $region34: #{ndnet_forward.2} parent=31 // pred_check_branch
              %185 = sbr.rel (0) target = $region36
            $region35: #{ndnet_forward.2} parent=31 // pred_region
              loop: start=0, step=1, limit=1
              $region37: #{ndnet_forward.2} parent=35 // loop_pre_header
                _
              $region38: #{ndnet_forward.2} parent=35 // loop_header
                %s187 = sphi 0, %s191
                %p188 = scmp.ge.s32.totalorder %s187, 1
                %s192 = sphi %s181, %s181
                %s193 = sphi %s175, %s175
              $region39: #{ndnet_forward.2} parent=35 // loop_header_branch
                %190 = sbr.rel (%p188) target = $region43
              $region40: #{ndnet_forward.2} parent=35 // loop_body
                %v194 = vld [vmem:[%s192] sm:$0xff]
                %195 = vst [vmem:[%s193] sm:$0xff] %v194
                %v196 = vld [vmem:[%s192 + $0x8] sm:$0xff]
                %197 = vst [vmem:[%s193 + $0x8] sm:$0xff] %v196
                %v198 = vld [vmem:[%s192 + $0x20] sm:$0xff]
                %199 = vst [vmem:[%s193 + $0x10] sm:$0xff] %v198
                %v200 = vld [vmem:[%s192 + $0x28] sm:$0xff]
                %201 = vst [vmem:[%s193 + $0x18] sm:$0xff] %v200
                %v202 = vld [vmem:[%s192 + $0x40] sm:$0xff]
                %203 = vst [vmem:[%s193 + $0x20] sm:$0xff] %v202
                %v204 = vld [vmem:[%s192 + $0x48] sm:$0xff]
                %205 = vst [vmem:[%s193 + $0x28] sm:$0xff] %v204
                %v206 = vld [vmem:[%s192 + $0x60] sm:$0xff]
                %207 = vst [vmem:[%s193 + $0x30] sm:$0xff] %v206
                %v208 = vld [vmem:[%s192 + $0x68] sm:$0xff]
                %209 = vst [vmem:[%s193 + $0x38] sm:$0xff] %v208
                %v210 = vld [vmem:[%s192 + $0x80] sm:$0xff]
                %211 = vst [vmem:[%s193 + $0x40] sm:$0xff] %v210
                %v212 = vld [vmem:[%s192 + $0x88] sm:$0xff]
                %213 = vst [vmem:[%s193 + $0x48] sm:$0xff] %v212
                %v214 = vld [vmem:[%s192 + $0xa0] sm:$0xff]
                %215 = vst [vmem:[%s193 + $0x50] sm:$0xff] %v214
                %v216 = vld [vmem:[%s192 + $0xa8] sm:$0xff]
                %217 = vst [vmem:[%s193 + $0x58] sm:$0xff] %v216
                %v218 = vld [vmem:[%s192 + $0xc0] sm:$0xff]
                %219 = vst [vmem:[%s193 + $0x60] sm:$0xff] %v218
                %v220 = vld [vmem:[%s192 + $0xc8] sm:$0xff]
                %221 = vst [vmem:[%s193 + $0x68] sm:$0xff] %v220
                %v222 = vld [vmem:[%s192 + $0xe0] sm:$0xff]
                %223 = vst [vmem:[%s193 + $0x70] sm:$0xff] %v222
                %v224 = vld [vmem:[%s192 + $0xe8] sm:$0xff]
                %225 = vst [vmem:[%s193 + $0x78] sm:$0xff] %v224
                %v226 = vld [vmem:[%s192 + $0x100] sm:$0xff]
                %227 = vst [vmem:[%s193 + $0x80] sm:$0xff] %v226
                %v228 = vld [vmem:[%s192 + $0x108] sm:$0xff]
                %229 = vst [vmem:[%s193 + $0x88] sm:$0xff] %v228
                %v230 = vld [vmem:[%s192 + $0x120] sm:$0xff]
                %231 = vst [vmem:[%s193 + $0x90] sm:$0xff] %v230
                %v232 = vld [vmem:[%s192 + $0x128] sm:$0xff]
                %233 = vst [vmem:[%s193 + $0x98] sm:$0xff] %v232
                %v234 = vld [vmem:[%s192 + $0x140] sm:$0xff]
                %235 = vst [vmem:[%s193 + $0xa0] sm:$0xff] %v234
                %v236 = vld [vmem:[%s192 + $0x148] sm:$0xff]
                %237 = vst [vmem:[%s193 + $0xa8] sm:$0xff] %v236
                %v238 = vld [vmem:[%s192 + $0x160] sm:$0xff]
                %239 = vst [vmem:[%s193 + $0xb0] sm:$0xff] %v238
                %v240 = vld [vmem:[%s192 + $0x168] sm:$0xff]
                %241 = vst [vmem:[%s193 + $0xb8] sm:$0xff] %v240
                %v242 = vld [vmem:[%s192 + $0x180] sm:$0xff]
                %243 = vst [vmem:[%s193 + $0xc0] sm:$0xff] %v242
                %v244 = vld [vmem:[%s192 + $0x188] sm:$0xff]
                %245 = vst [vmem:[%s193 + $0xc8] sm:$0xff] %v244
                %v246 = vld [vmem:[%s192 + $0x1a0] sm:$0xff]
                %247 = vst [vmem:[%s193 + $0xd0] sm:$0xff] %v246
                %v248 = vld [vmem:[%s192 + $0x1a8] sm:$0xff]
                %249 = vst [vmem:[%s193 + $0xd8] sm:$0xff] %v248
                %v250 = vld [vmem:[%s192 + $0x1c0] sm:$0xff]
                %251 = vst [vmem:[%s193 + $0xe0] sm:$0xff] %v250
                %v252 = vld [vmem:[%s192 + $0x1c8] sm:$0xff]
                %253 = vst [vmem:[%s193 + $0xe8] sm:$0xff] %v252
                %v254 = vld [vmem:[%s192 + $0x1e0] sm:$0xff]
                %255 = vst [vmem:[%s193 + $0xf0] sm:$0xff] %v254
                %v256 = vld [vmem:[%s192 + $0x1e8] sm:$0xff]
                %257 = vst [vmem:[%s193 + $0xf8] sm:$0xff] %v256
                %v258 = vld [vmem:[%s192 + $0x200] sm:$0xff]
                %259 = vst [vmem:[%s193 + $0x100] sm:$0xff] %v258
                %v260 = vld [vmem:[%s192 + $0x208] sm:$0xff]
                %261 = vst [vmem:[%s193 + $0x108] sm:$0xff] %v260
                %v262 = vld [vmem:[%s192 + $0x220] sm:$0xff]
                %263 = vst [vmem:[%s193 + $0x110] sm:$0xff] %v262
                %v264 = vld [vmem:[%s192 + $0x228] sm:$0xff]
                %265 = vst [vmem:[%s193 + $0x118] sm:$0xff] %v264
                %v266 = vld [vmem:[%s192 + $0x240] sm:$0xff]
                %267 = vst [vmem:[%s193 + $0x120] sm:$0xff] %v266
                %v268 = vld [vmem:[%s192 + $0x248] sm:$0xff]
                %269 = vst [vmem:[%s193 + $0x128] sm:$0xff] %v268
                %v270 = vld [vmem:[%s192 + $0x260] sm:$0xff]
                %271 = vst [vmem:[%s193 + $0x130] sm:$0xff] %v270
                %v272 = vld [vmem:[%s192 + $0x268] sm:$0xff]
                %273 = vst [vmem:[%s193 + $0x138] sm:$0xff] %v272
                %v274 = vld [vmem:[%s192 + $0x280] sm:$0xff]
                %275 = vst [vmem:[%s193 + $0x140] sm:$0xff] %v274
                %v276 = vld [vmem:[%s192 + $0x288] sm:$0xff]
                %277 = vst [vmem:[%s193 + $0x148] sm:$0xff] %v276
                %v278 = vld [vmem:[%s192 + $0x2a0] sm:$0xff]
                %279 = vst [vmem:[%s193 + $0x150] sm:$0xff] %v278
                %v280 = vld [vmem:[%s192 + $0x2a8] sm:$0xff]
                %281 = vst [vmem:[%s193 + $0x158] sm:$0xff] %v280
                %v282 = vld [vmem:[%s192 + $0x2c0] sm:$0xff]
                %283 = vst [vmem:[%s193 + $0x160] sm:$0xff] %v282
                %v284 = vld [vmem:[%s192 + $0x2c8] sm:$0xff]
                %285 = vst [vmem:[%s193 + $0x168] sm:$0xff] %v284
                %v286 = vld [vmem:[%s192 + $0x2e0] sm:$0xff]
                %287 = vst [vmem:[%s193 + $0x170] sm:$0xff] %v286
                %v288 = vld [vmem:[%s192 + $0x2e8] sm:$0xff]
                %289 = vst [vmem:[%s193 + $0x178] sm:$0xff] %v288
                %v290 = vld [vmem:[%s192 + $0x300] sm:$0xff]
                %291 = vst [vmem:[%s193 + $0x180] sm:$0xff] %v290
                %v292 = vld [vmem:[%s192 + $0x308] sm:$0xff]
                %293 = vst [vmem:[%s193 + $0x188] sm:$0xff] %v292
                %v294 = vld [vmem:[%s192 + $0x320] sm:$0xff]
                %295 = vst [vmem:[%s193 + $0x190] sm:$0xff] %v294
                %v296 = vld [vmem:[%s192 + $0x328] sm:$0xff]
                %297 = vst [vmem:[%s193 + $0x198] sm:$0xff] %v296
                %v298 = vld [vmem:[%s192 + $0x340] sm:$0xff]
                %299 = vst [vmem:[%s193 + $0x1a0] sm:$0xff] %v298
                %v300 = vld [vmem:[%s192 + $0x348] sm:$0xff]
                %301 = vst [vmem:[%s193 + $0x1a8] sm:$0xff] %v300
                %v302 = vld [vmem:[%s192 + $0x360] sm:$0xff]
                %303 = vst [vmem:[%s193 + $0x1b0] sm:$0xff] %v302
                %v304 = vld [vmem:[%s192 + $0x368] sm:$0xff]
                %305 = vst [vmem:[%s193 + $0x1b8] sm:$0xff] %v304
                %v306 = vld [vmem:[%s192 + $0x380] sm:$0xff]
                %307 = vst [vmem:[%s193 + $0x1c0] sm:$0xff] %v306
                %v308 = vld [vmem:[%s192 + $0x388] sm:$0xff]
                %309 = vst [vmem:[%s193 + $0x1c8] sm:$0xff] %v308
                %v310 = vld [vmem:[%s192 + $0x3a0] sm:$0xff]
                %311 = vst [vmem:[%s193 + $0x1d0] sm:$0xff] %v310
                %v312 = vld [vmem:[%s192 + $0x3a8] sm:$0xff]
                %313 = vst [vmem:[%s193 + $0x1d8] sm:$0xff] %v312
                %v314 = vld [vmem:[%s192 + $0x3c0] sm:$0xff]
                %315 = vst [vmem:[%s193 + $0x1e0] sm:$0xff] %v314
                %v316 = vld [vmem:[%s192 + $0x3c8] sm:$0xff]
                %317 = vst [vmem:[%s193 + $0x1e8] sm:$0xff] %v316
                %v318 = vld [vmem:[%s192 + $0x3e0] sm:$0xff]
                %319 = vst [vmem:[%s193 + $0x1f0] sm:$0xff] %v318
                %v320 = vld [vmem:[%s192 + $0x3e8] sm:$0xff]
                %321 = vst [vmem:[%s193 + $0x1f8] sm:$0xff] %v320
              $region41: #{ndnet_forward.2} parent=35 // loop_footer
                %s191 = sadd.s32 1, %s187
              $region42: #{ndnet_forward.2} parent=35 // loop_footer_branch
                %186 = sbr.rel target = $region38
              $region43: #{ndnet_forward.2} parent=35 // loop_exit
                _
            $region36: #{ndnet_forward.2} parent=31 // pred_fallthru
              _
            // Predicated region
            $region44: #{ndnet_forward.2} parent=31 // pred_check
              _
            $region45: #{ndnet_forward.2} parent=31 // pred_check_branch
              %323 = sbr.rel target = $region47
            $region46: #{ndnet_forward.2} parent=31 // pred_region
              _
            $region47: #{ndnet_forward.2} parent=31 // pred_fallthru
              _
          $region32: #{ndnet_forward.2} parent=27 // pred_fallthru
            _
          %324 = vnop
        $region28: #{ndnet_forward.2} parent=23 // pred_fallthru
          _
        // Predicated region
        $region48: #{ndnet_forward.2} parent=23 // pred_check
          %p325 = pneg %p70
        $region49: #{ndnet_forward.2} parent=23 // pred_check_branch
          %327 = sbr.rel (%p325) target = $region51
        $region50: #{ndnet_forward.2} parent=23 // pred_region
          %s328 = smul.u32 32, %s18
          %p329 = scmp.lt.s32.totalorder %s328, 63
          %s330 = scalar_select %p329, %s328, 63
          %s331 = smul.addr %s330, 8
          %s332 = scalar_lea.vmem %s1, %s331
          %s333 = smul.u32 32, %s18
        $region51: #{ndnet_forward.2} parent=23 // pred_fallthru
          _
      $region24: #{ndnet_forward.2} parent=5 // pred_fallthru
        _
      %p334 = scmp.le.s32.totalorder 1, %s10
      %p335 = scmp.lt.s32.totalorder %s10, 3
      %p336 = pnand %p334, %p335
      %p337 = pneg %p336
      // Predicated region
      $region52: #{ndnet_forward.2} parent=5 // pred_check
        _
      $region53: #{ndnet_forward.2} parent=5 // pred_check_branch
        %339 = sbr.rel (%p336) target = $region55
      $region54: #{ndnet_forward.2} parent=5 // pred_region
        %s340 = ssub.s32 %s10, 1
        %s341 = sand.u32 %s37, 1
        %s342 = sand.u32 %s37, 1
        %s343 = smul.addr %s342, 512
        %s344 = scalar_lea.vmem [#allocation3], %s343
        // Predicated region
        $region56: #{ndnet_forward.2} parent=54 // pred_check
          %p345 = pneg %p50
        $region57: #{ndnet_forward.2} parent=54 // pred_check_branch
          %347 = sbr.rel (%p345) target = $region59
        $region58: #{ndnet_forward.2} parent=54 // pred_region
          _
        $region59: #{ndnet_forward.2} parent=54 // pred_fallthru
          _
        %s348 = sand.u32 %s37, 1
        %s349 = sand.u32 %s37, 1
        %s350 = smul.addr %s349, 512
        %s351 = scalar_lea.vmem [#allocation3], %s350
        %p352 = pneg %p50
        %p353 = pneg %p47
        %s354 = smul.u32 32, %s20
        %p355 = scmp.lt.s32.totalorder %s354, 63
        %s356 = scalar_select %p355, %s354, 63
        %s357 = smul.addr %s356, 8
        %s358 = scalar_lea.vmem %s1, %s357
        %p359 = pneg %p76
        %p360 = pneg %p73
        %p361 = pneg %p97
        %p362 = pneg %p94
        %p363 = pneg %p118
        %p364 = pneg %p115
        %p365 = pneg %p144
        %p366 = pneg %p141
        %s367 = smul.u32 32, %s19
        %p368 = scmp.lt.s32.totalorder %s367, 31
        %s369 = scalar_select %p368, %s367, 31
        %s370 = smul.addr %s369, 8
        %s371 = scalar_lea.vmem %s4, %s370
        %s372 = smul.u32 32, %s19
        %s373 = smul.u32 2, %s20
        %s374 = smul.u32 32, %s20
        %p375 = scmp.lt.s32.totalorder %s374, 63
        %s376 = scalar_select %p375, %s374, 63
        %s377 = smul.addr %s376, 8
        %s378 = scalar_lea.vmem %s1, %s377
        %s379 = smul.u32 32, %s20
        %s380 = smul.u32 32, %s19
        %p381 = scmp.lt.s32.totalorder %s380, 31
        %s382 = scalar_select %p381, %s380, 31
        %s383 = smul.addr %s382, 8
        %s384 = scalar_lea.vmem %s4, %s383
        %s385 = smul.u32 32, %s19
        %p386 = scmp.eq.s32.totalorder %s20, 0
        // Predicated region
        $region60: #{ndnet_forward.2} parent=54 // pred_check
          %p387 = pneg %p386
        $region61: #{ndnet_forward.2} parent=54 // pred_check_branch
          %389 = sbr.rel (%p387) target = $region63
        $region62: #{ndnet_forward.2} parent=54 // pred_region
          %390 = vst [vmem:[#allocation2] sm:$0xff] 0.0
          %391 = vst [vmem:[#allocation2 + $0x8] sm:$0xff] 0.0
          %392 = vst [vmem:[#allocation2 + $0x10] sm:$0xff] 0.0
          %393 = vst [vmem:[#allocation2 + $0x18] sm:$0xff] 0.0
          %394 = vst [vmem:[#allocation2 + $0x20] sm:$0xff] 0.0
          %395 = vst [vmem:[#allocation2 + $0x28] sm:$0xff] 0.0
          %396 = vst [vmem:[#allocation2 + $0x30] sm:$0xff] 0.0
          %397 = vst [vmem:[#allocation2 + $0x38] sm:$0xff] 0.0
          %398 = vst [vmem:[#allocation2 + $0x40] sm:$0xff] 0.0
          %399 = vst [vmem:[#allocation2 + $0x48] sm:$0xff] 0.0
          %400 = vst [vmem:[#allocation2 + $0x50] sm:$0xff] 0.0
          %401 = vst [vmem:[#allocation2 + $0x58] sm:$0xff] 0.0
          %402 = vst [vmem:[#allocation2 + $0x60] sm:$0xff] 0.0
          %403 = vst [vmem:[#allocation2 + $0x68] sm:$0xff] 0.0
          %404 = vst [vmem:[#allocation2 + $0x70] sm:$0xff] 0.0
          %405 = vst [vmem:[#allocation2 + $0x78] sm:$0xff] 0.0
          %406 = vst [vmem:[#allocation2 + $0x80] sm:$0xff] 0.0
          %407 = vst [vmem:[#allocation2 + $0x88] sm:$0xff] 0.0
          %408 = vst [vmem:[#allocation2 + $0x90] sm:$0xff] 0.0
          %409 = vst [vmem:[#allocation2 + $0x98] sm:$0xff] 0.0
          %410 = vst [vmem:[#allocation2 + $0xa0] sm:$0xff] 0.0
          %411 = vst [vmem:[#allocation2 + $0xa8] sm:$0xff] 0.0
          %412 = vst [vmem:[#allocation2 + $0xb0] sm:$0xff] 0.0
          %413 = vst [vmem:[#allocation2 + $0xb8] sm:$0xff] 0.0
          %414 = vst [vmem:[#allocation2 + $0xc0] sm:$0xff] 0.0
          %415 = vst [vmem:[#allocation2 + $0xc8] sm:$0xff] 0.0
          %416 = vst [vmem:[#allocation2 + $0xd0] sm:$0xff] 0.0
          %417 = vst [vmem:[#allocation2 + $0xd8] sm:$0xff] 0.0
          %418 = vst [vmem:[#allocation2 + $0xe0] sm:$0xff] 0.0
          %419 = vst [vmem:[#allocation2 + $0xe8] sm:$0xff] 0.0
          %420 = vst [vmem:[#allocation2 + $0xf0] sm:$0xff] 0.0
          %421 = vst [vmem:[#allocation2 + $0xf8] sm:$0xff] 0.0
        $region63: #{ndnet_forward.2} parent=54 // pred_fallthru
          _
        %v422 = vld [vmem:[#allocation2] sm:$0xff]
        %v423 = vld [vmem:[#allocation2 + $0x8] sm:$0xff]
        %v424 = vld [vmem:[#allocation2 + $0x10] sm:$0xff]
        %v425 = vld [vmem:[#allocation2 + $0x18] sm:$0xff]
        %v426 = vld [vmem:[#allocation2 + $0x20] sm:$0xff]
        %v427 = vld [vmem:[#allocation2 + $0x28] sm:$0xff]
        %v428 = vld [vmem:[#allocation2 + $0x30] sm:$0xff]
        %v429 = vld [vmem:[#allocation2 + $0x38] sm:$0xff]
        %v430 = vld [vmem:[#allocation2 + $0x40] sm:$0xff]
        %v431 = vld [vmem:[#allocation2 + $0x48] sm:$0xff]
        %v432 = vld [vmem:[#allocation2 + $0x50] sm:$0xff]
        %v433 = vld [vmem:[#allocation2 + $0x58] sm:$0xff]
        %v434 = vld [vmem:[#allocation2 + $0x60] sm:$0xff]
        %v435 = vld [vmem:[#allocation2 + $0x68] sm:$0xff]
        %v436 = vld [vmem:[#allocation2 + $0x70] sm:$0xff]
        %v437 = vld [vmem:[#allocation2 + $0x78] sm:$0xff]
        %v438 = vld [vmem:[#allocation2 + $0x80] sm:$0xff]
        %v439 = vld [vmem:[#allocation2 + $0x88] sm:$0xff]
        %v440 = vld [vmem:[#allocation2 + $0x90] sm:$0xff]
        %v441 = vld [vmem:[#allocation2 + $0x98] sm:$0xff]
        %v442 = vld [vmem:[#allocation2 + $0xa0] sm:$0xff]
        %v443 = vld [vmem:[#allocation2 + $0xa8] sm:$0xff]
        %v444 = vld [vmem:[#allocation2 + $0xb0] sm:$0xff]
        %v445 = vld [vmem:[#allocation2 + $0xb8] sm:$0xff]
        %v446 = vld [vmem:[#allocation2 + $0xc0] sm:$0xff]
        %v447 = vld [vmem:[#allocation2 + $0xc8] sm:$0xff]
        %v448 = vld [vmem:[#allocation2 + $0xd0] sm:$0xff]
        %v449 = vld [vmem:[#allocation2 + $0xd8] sm:$0xff]
        %v450 = vld [vmem:[#allocation2 + $0xe0] sm:$0xff]
        %v451 = vld [vmem:[#allocation2 + $0xe8] sm:$0xff]
        %v452 = vld [vmem:[#allocation2 + $0xf0] sm:$0xff]
        %v453 = vld [vmem:[#allocation2 + $0xf8] sm:$0xff]
        %v454 = vld [vmem:[%s344] sm:$0xff]
        %v455 = vld [vmem:[%s344 + $0x8] sm:$0xff]
        %v456 = vld [vmem:[%s344 + $0x10] sm:$0xff]
        %v457 = vld [vmem:[%s344 + $0x18] sm:$0xff]
        %v458 = vld [vmem:[%s344 + $0x20] sm:$0xff]
        %v459 = vld [vmem:[%s344 + $0x28] sm:$0xff]
        %v460 = vld [vmem:[%s344 + $0x30] sm:$0xff]
        %v461 = vld [vmem:[%s344 + $0x38] sm:$0xff]
        %v462 = vld [vmem:[%s344 + $0x40] sm:$0xff]
        %v463 = vld [vmem:[%s344 + $0x48] sm:$0xff]
        %v464 = vld [vmem:[%s344 + $0x50] sm:$0xff]
        %v465 = vld [vmem:[%s344 + $0x58] sm:$0xff]
        %v466 = vld [vmem:[%s344 + $0x60] sm:$0xff]
        %v467 = vld [vmem:[%s344 + $0x68] sm:$0xff]
        %v468 = vld [vmem:[%s344 + $0x70] sm:$0xff]
        %v469 = vld [vmem:[%s344 + $0x78] sm:$0xff]
        %v470 = vld [vmem:[%s344 + $0x80] sm:$0xff]
        %v471 = vld [vmem:[%s344 + $0x88] sm:$0xff]
        %v472 = vld [vmem:[%s344 + $0x90] sm:$0xff]
        %v473 = vld [vmem:[%s344 + $0x98] sm:$0xff]
        %v474 = vld [vmem:[%s344 + $0xa0] sm:$0xff]
        %v475 = vld [vmem:[%s344 + $0xa8] sm:$0xff]
        %v476 = vld [vmem:[%s344 + $0xb0] sm:$0xff]
        %v477 = vld [vmem:[%s344 + $0xb8] sm:$0xff]
        %v478 = vld [vmem:[%s344 + $0xc0] sm:$0xff]
        %v479 = vld [vmem:[%s344 + $0xc8] sm:$0xff]
        %v480 = vld [vmem:[%s344 + $0xd0] sm:$0xff]
        %v481 = vld [vmem:[%s344 + $0xd8] sm:$0xff]
        %v482 = vld [vmem:[%s344 + $0xe0] sm:$0xff]
        %v483 = vld [vmem:[%s344 + $0xe8] sm:$0xff]
        %v484 = vld [vmem:[%s344 + $0xf0] sm:$0xff]
        %v485 = vld [vmem:[%s344 + $0xf8] sm:$0xff]
        %v486 = vld [vmem:[%s344 + $0x100] sm:$0xff]
        %v487 = vld [vmem:[%s344 + $0x108] sm:$0xff]
        %v488 = vld [vmem:[%s344 + $0x110] sm:$0xff]
        %v489 = vld [vmem:[%s344 + $0x118] sm:$0xff]
        %v490 = vld [vmem:[%s344 + $0x120] sm:$0xff]
        %v491 = vld [vmem:[%s344 + $0x128] sm:$0xff]
        %v492 = vld [vmem:[%s344 + $0x130] sm:$0xff]
        %v493 = vld [vmem:[%s344 + $0x138] sm:$0xff]
        %v494 = vld [vmem:[%s344 + $0x140] sm:$0xff]
        %v495 = vld [vmem:[%s344 + $0x148] sm:$0xff]
        %v496 = vld [vmem:[%s344 + $0x150] sm:$0xff]
        %v497 = vld [vmem:[%s344 + $0x158] sm:$0xff]
        %v498 = vld [vmem:[%s344 + $0x160] sm:$0xff]
        %v499 = vld [vmem:[%s344 + $0x168] sm:$0xff]
        %v500 = vld [vmem:[%s344 + $0x170] sm:$0xff]
        %v501 = vld [vmem:[%s344 + $0x178] sm:$0xff]
        %v502 = vld [vmem:[%s344 + $0x180] sm:$0xff]
        %v503 = vld [vmem:[%s344 + $0x188] sm:$0xff]
        %v504 = vld [vmem:[%s344 + $0x190] sm:$0xff]
        %v505 = vld [vmem:[%s344 + $0x198] sm:$0xff]
        %v506 = vld [vmem:[%s344 + $0x1a0] sm:$0xff]
        %v507 = vld [vmem:[%s344 + $0x1a8] sm:$0xff]
        %v508 = vld [vmem:[%s344 + $0x1b0] sm:$0xff]
        %v509 = vld [vmem:[%s344 + $0x1b8] sm:$0xff]
        %v510 = vld [vmem:[%s344 + $0x1c0] sm:$0xff]
        %v511 = vld [vmem:[%s344 + $0x1c8] sm:$0xff]
        %v512 = vld [vmem:[%s344 + $0x1d0] sm:$0xff]
        %v513 = vld [vmem:[%s344 + $0x1d8] sm:$0xff]
        %v514 = vld [vmem:[%s344 + $0x1e0] sm:$0xff]
        %v515 = vld [vmem:[%s344 + $0x1e8] sm:$0xff]
        %v516 = vld [vmem:[%s344 + $0x1f0] sm:$0xff]
        %v517 = vld [vmem:[%s344 + $0x1f8] sm:$0xff]
        %v518 = vld [vmem:[%s378] sm:$0xff]
        %v519 = vld [vmem:[%s378 + $0x8] sm:$0xff]
        %v520 = vld [vmem:[%s378 + $0x10] sm:$0xff]
        %v521 = vld [vmem:[%s378 + $0x18] sm:$0xff]
        %v522 = vld [vmem:[%s378 + $0x20] sm:$0xff]
        %v523 = vld [vmem:[%s378 + $0x28] sm:$0xff]
        %v524 = vld [vmem:[%s378 + $0x30] sm:$0xff]
        %v525 = vld [vmem:[%s378 + $0x38] sm:$0xff]
        %v526 = vld [vmem:[%s378 + $0x40] sm:$0xff]
        %v527 = vld [vmem:[%s378 + $0x48] sm:$0xff]
        %v528 = vld [vmem:[%s378 + $0x50] sm:$0xff]
        %v529 = vld [vmem:[%s378 + $0x58] sm:$0xff]
        %v530 = vld [vmem:[%s378 + $0x60] sm:$0xff]
        %v531 = vld [vmem:[%s378 + $0x68] sm:$0xff]
        %v532 = vld [vmem:[%s378 + $0x70] sm:$0xff]
        %v533 = vld [vmem:[%s378 + $0x78] sm:$0xff]
        %v534 = vld [vmem:[%s378 + $0x80] sm:$0xff]
        %v535 = vld [vmem:[%s378 + $0x88] sm:$0xff]
        %v536 = vld [vmem:[%s378 + $0x90] sm:$0xff]
        %v537 = vld [vmem:[%s378 + $0x98] sm:$0xff]
        %v538 = vld [vmem:[%s378 + $0xa0] sm:$0xff]
        %v539 = vld [vmem:[%s378 + $0xa8] sm:$0xff]
        %v540 = vld [vmem:[%s378 + $0xb0] sm:$0xff]
        %v541 = vld [vmem:[%s378 + $0xb8] sm:$0xff]
        %v542 = vld [vmem:[%s378 + $0xc0] sm:$0xff]
        %v543 = vld [vmem:[%s378 + $0xc8] sm:$0xff]
        %v544 = vld [vmem:[%s378 + $0xd0] sm:$0xff]
        %v545 = vld [vmem:[%s378 + $0xd8] sm:$0xff]
        %v546 = vld [vmem:[%s378 + $0xe0] sm:$0xff]
        %v547 = vld [vmem:[%s378 + $0xe8] sm:$0xff]
        %v548 = vld [vmem:[%s378 + $0xf0] sm:$0xff]
        %v549 = vld [vmem:[%s378 + $0xf8] sm:$0xff]
        %550 = vmatpush.msra.mxu0 %v533
        %551 = vmatpush.msra.mxu0 %v532
        %552 = vmatpush.msra.mxu0 %v531
        %553 = vmatpush.msra.mxu0 %v530
        %554 = vmatpush.msra.mxu0 %v529
        %555 = vmatpush.msra.mxu0 %v528
        %556 = vmatpush.msra.mxu0 %v527
        %557 = vmatpush.msra.mxu0 %v526
        %558 = vmatpush.msra.mxu0 %v525
        %559 = vmatpush.msra.mxu0 %v524
        %560 = vmatpush.msra.mxu0 %v523
        %561 = vmatpush.msra.mxu0 %v522
        %562 = vmatpush.msra.mxu0 %v521
        %563 = vmatpush.msra.mxu0 %v520
        %564 = vmatpush.msra.mxu0 %v519
        %565 = vmatpush.msra.mxu0 %v518
        %566 = vmatmul.f32.gmra.mxu0 %v454
        %v567 = vpop.f32.mrf.mxu0
        %v568 = vadd.f32 0.0, %v567
        %569 = vmatmul.f32.gmra.mxu0 %v456
        %v570 = vpop.f32.mrf.mxu0
        %v571 = vadd.f32 0.0, %v570
        %572 = vmatmul.f32.gmra.mxu0 %v458
        %v573 = vpop.f32.mrf.mxu0
        %v574 = vadd.f32 0.0, %v573
        %575 = vmatmul.f32.gmra.mxu0 %v460
        %v576 = vpop.f32.mrf.mxu0
        %v577 = vadd.f32 0.0, %v576
        %578 = vmatmul.f32.gmra.mxu0 %v462
        %v579 = vpop.f32.mrf.mxu0
        %v580 = vadd.f32 0.0, %v579
        %581 = vmatmul.f32.gmra.mxu0 %v464
        %v582 = vpop.f32.mrf.mxu0
        %v583 = vadd.f32 0.0, %v582
        %584 = vmatmul.f32.gmra.mxu0 %v466
        %v585 = vpop.f32.mrf.mxu0
        %v586 = vadd.f32 0.0, %v585
        %587 = vmatmul.f32.gmra.mxu0 %v468
        %v588 = vpop.f32.mrf.mxu0
        %v589 = vadd.f32 0.0, %v588
        %590 = vmatmul.f32.gmra.mxu0 %v470
        %v591 = vpop.f32.mrf.mxu0
        %v592 = vadd.f32 0.0, %v591
        %593 = vmatmul.f32.gmra.mxu0 %v472
        %v594 = vpop.f32.mrf.mxu0
        %v595 = vadd.f32 0.0, %v594
        %596 = vmatmul.f32.gmra.mxu0 %v474
        %v597 = vpop.f32.mrf.mxu0
        %v598 = vadd.f32 0.0, %v597
        %599 = vmatmul.f32.gmra.mxu0 %v476
        %v600 = vpop.f32.mrf.mxu0
        %v601 = vadd.f32 0.0, %v600
        %602 = vmatmul.f32.gmra.mxu0 %v478
        %v603 = vpop.f32.mrf.mxu0
        %v604 = vadd.f32 0.0, %v603
        %605 = vmatmul.f32.gmra.mxu0 %v480
        %v606 = vpop.f32.mrf.mxu0
        %v607 = vadd.f32 0.0, %v606
        %608 = vmatmul.f32.gmra.mxu0 %v482
        %v609 = vpop.f32.mrf.mxu0
        %v610 = vadd.f32 0.0, %v609
        %611 = vmatmul.f32.gmra.mxu0 %v484
        %v612 = vpop.f32.mrf.mxu0
        %v613 = vadd.f32 0.0, %v612
        %614 = vmatmul.f32.gmra.mxu0 %v486
        %v615 = vpop.f32.mrf.mxu0
        %v616 = vadd.f32 0.0, %v615
        %617 = vmatmul.f32.gmra.mxu0 %v488
        %v618 = vpop.f32.mrf.mxu0
        %v619 = vadd.f32 0.0, %v618
        %620 = vmatmul.f32.gmra.mxu0 %v490
        %v621 = vpop.f32.mrf.mxu0
        %v622 = vadd.f32 0.0, %v621
        %623 = vmatmul.f32.gmra.mxu0 %v492
        %v624 = vpop.f32.mrf.mxu0
        %v625 = vadd.f32 0.0, %v624
        %626 = vmatmul.f32.gmra.mxu0 %v494
        %v627 = vpop.f32.mrf.mxu0
        %v628 = vadd.f32 0.0, %v627
        %629 = vmatmul.f32.gmra.mxu0 %v496
        %v630 = vpop.f32.mrf.mxu0
        %v631 = vadd.f32 0.0, %v630
        %632 = vmatmul.f32.gmra.mxu0 %v498
        %v633 = vpop.f32.mrf.mxu0
        %v634 = vadd.f32 0.0, %v633
        %635 = vmatmul.f32.gmra.mxu0 %v500
        %v636 = vpop.f32.mrf.mxu0
        %v637 = vadd.f32 0.0, %v636
        %638 = vmatmul.f32.gmra.mxu0 %v502
        %v639 = vpop.f32.mrf.mxu0
        %v640 = vadd.f32 0.0, %v639
        %641 = vmatmul.f32.gmra.mxu0 %v504
        %v642 = vpop.f32.mrf.mxu0
        %v643 = vadd.f32 0.0, %v642
        %644 = vmatmul.f32.gmra.mxu0 %v506
        %v645 = vpop.f32.mrf.mxu0
        %v646 = vadd.f32 0.0, %v645
        %647 = vmatmul.f32.gmra.mxu0 %v508
        %v648 = vpop.f32.mrf.mxu0
        %v649 = vadd.f32 0.0, %v648
        %650 = vmatmul.f32.gmra.mxu0 %v510
        %v651 = vpop.f32.mrf.mxu0
        %v652 = vadd.f32 0.0, %v651
        %653 = vmatmul.f32.gmra.mxu0 %v512
        %v654 = vpop.f32.mrf.mxu0
        %v655 = vadd.f32 0.0, %v654
        %656 = vmatmul.f32.gmra.mxu0 %v514
        %v657 = vpop.f32.mrf.mxu0
        %v658 = vadd.f32 0.0, %v657
        %659 = vmatmul.f32.gmra.mxu0 %v516
        %v660 = vpop.f32.mrf.mxu0
        %v661 = vadd.f32 0.0, %v660
        %662 = vdwg.mxu0
        %663 = vmatpush.msra.mxu0 %v549
        %664 = vmatpush.msra.mxu0 %v548
        %665 = vmatpush.msra.mxu0 %v547
        %666 = vmatpush.msra.mxu0 %v546
        %667 = vmatpush.msra.mxu0 %v545
        %668 = vmatpush.msra.mxu0 %v544
        %669 = vmatpush.msra.mxu0 %v543
        %670 = vmatpush.msra.mxu0 %v542
        %671 = vmatpush.msra.mxu0 %v541
        %672 = vmatpush.msra.mxu0 %v540
        %673 = vmatpush.msra.mxu0 %v539
        %674 = vmatpush.msra.mxu0 %v538
        %675 = vmatpush.msra.mxu0 %v537
        %676 = vmatpush.msra.mxu0 %v536
        %677 = vmatpush.msra.mxu0 %v535
        %678 = vmatpush.msra.mxu0 %v534
        %679 = vmatmul.f32.gmra.mxu0 %v455
        %v680 = vpop.f32.mrf.mxu0
        %v681 = vadd.f32 %v568, %v680
        %682 = vmatmul.f32.gmra.mxu0 %v457
        %v683 = vpop.f32.mrf.mxu0
        %v684 = vadd.f32 %v571, %v683
        %685 = vmatmul.f32.gmra.mxu0 %v459
        %v686 = vpop.f32.mrf.mxu0
        %v687 = vadd.f32 %v574, %v686
        %688 = vmatmul.f32.gmra.mxu0 %v461
        %v689 = vpop.f32.mrf.mxu0
        %v690 = vadd.f32 %v577, %v689
        %691 = vmatmul.f32.gmra.mxu0 %v463
        %v692 = vpop.f32.mrf.mxu0
        %v693 = vadd.f32 %v580, %v692
        %694 = vmatmul.f32.gmra.mxu0 %v465
        %v695 = vpop.f32.mrf.mxu0
        %v696 = vadd.f32 %v583, %v695
        %697 = vmatmul.f32.gmra.mxu0 %v467
        %v698 = vpop.f32.mrf.mxu0
        %v699 = vadd.f32 %v586, %v698
        %700 = vmatmul.f32.gmra.mxu0 %v469
        %v701 = vpop.f32.mrf.mxu0
        %v702 = vadd.f32 %v589, %v701
        %703 = vmatmul.f32.gmra.mxu0 %v471
        %v704 = vpop.f32.mrf.mxu0
        %v705 = vadd.f32 %v592, %v704
        %706 = vmatmul.f32.gmra.mxu0 %v473
        %v707 = vpop.f32.mrf.mxu0
        %v708 = vadd.f32 %v595, %v707
        %709 = vmatmul.f32.gmra.mxu0 %v475
        %v710 = vpop.f32.mrf.mxu0
        %v711 = vadd.f32 %v598, %v710
        %712 = vmatmul.f32.gmra.mxu0 %v477
        %v713 = vpop.f32.mrf.mxu0
        %v714 = vadd.f32 %v601, %v713
        %715 = vmatmul.f32.gmra.mxu0 %v479
        %v716 = vpop.f32.mrf.mxu0
        %v717 = vadd.f32 %v604, %v716
        %718 = vmatmul.f32.gmra.mxu0 %v481
        %v719 = vpop.f32.mrf.mxu0
        %v720 = vadd.f32 %v607, %v719
        %721 = vmatmul.f32.gmra.mxu0 %v483
        %v722 = vpop.f32.mrf.mxu0
        %v723 = vadd.f32 %v610, %v722
        %724 = vmatmul.f32.gmra.mxu0 %v485
        %v725 = vpop.f32.mrf.mxu0
        %v726 = vadd.f32 %v613, %v725
        %727 = vmatmul.f32.gmra.mxu0 %v487
        %v728 = vpop.f32.mrf.mxu0
        %v729 = vadd.f32 %v616, %v728
        %730 = vmatmul.f32.gmra.mxu0 %v489
        %v731 = vpop.f32.mrf.mxu0
        %v732 = vadd.f32 %v619, %v731
        %733 = vmatmul.f32.gmra.mxu0 %v491
        %v734 = vpop.f32.mrf.mxu0
        %v735 = vadd.f32 %v622, %v734
        %736 = vmatmul.f32.gmra.mxu0 %v493
        %v737 = vpop.f32.mrf.mxu0
        %v738 = vadd.f32 %v625, %v737
        %739 = vmatmul.f32.gmra.mxu0 %v495
        %v740 = vpop.f32.mrf.mxu0
        %v741 = vadd.f32 %v628, %v740
        %742 = vmatmul.f32.gmra.mxu0 %v497
        %v743 = vpop.f32.mrf.mxu0
        %v744 = vadd.f32 %v631, %v743
        %745 = vmatmul.f32.gmra.mxu0 %v499
        %v746 = vpop.f32.mrf.mxu0
        %v747 = vadd.f32 %v634, %v746
        %748 = vmatmul.f32.gmra.mxu0 %v501
        %v749 = vpop.f32.mrf.mxu0
        %v750 = vadd.f32 %v637, %v749
        %751 = vmatmul.f32.gmra.mxu0 %v503
        %v752 = vpop.f32.mrf.mxu0
        %v753 = vadd.f32 %v640, %v752
        %754 = vmatmul.f32.gmra.mxu0 %v505
        %v755 = vpop.f32.mrf.mxu0
        %v756 = vadd.f32 %v643, %v755
        %757 = vmatmul.f32.gmra.mxu0 %v507
        %v758 = vpop.f32.mrf.mxu0
        %v759 = vadd.f32 %v646, %v758
        %760 = vmatmul.f32.gmra.mxu0 %v509
        %v761 = vpop.f32.mrf.mxu0
        %v762 = vadd.f32 %v649, %v761
        %763 = vmatmul.f32.gmra.mxu0 %v511
        %v764 = vpop.f32.mrf.mxu0
        %v765 = vadd.f32 %v652, %v764
        %766 = vmatmul.f32.gmra.mxu0 %v513
        %v767 = vpop.f32.mrf.mxu0
        %v768 = vadd.f32 %v655, %v767
        %769 = vmatmul.f32.gmra.mxu0 %v515
        %v770 = vpop.f32.mrf.mxu0
        %v771 = vadd.f32 %v658, %v770
        %772 = vmatmul.f32.gmra.mxu0 %v517
        %v773 = vpop.f32.mrf.mxu0
        %v774 = vadd.f32 %v661, %v773
        %775 = vdwg.mxu0
        %v776 = vadd.f32 %v422, %v681
        %v777 = vadd.f32 %v423, %v684
        %v778 = vadd.f32 %v424, %v687
        %v779 = vadd.f32 %v425, %v690
        %v780 = vadd.f32 %v426, %v693
        %v781 = vadd.f32 %v427, %v696
        %v782 = vadd.f32 %v428, %v699
        %v783 = vadd.f32 %v429, %v702
        %v784 = vadd.f32 %v430, %v705
        %v785 = vadd.f32 %v431, %v708
        %v786 = vadd.f32 %v432, %v711
        %v787 = vadd.f32 %v433, %v714
        %v788 = vadd.f32 %v434, %v717
        %v789 = vadd.f32 %v435, %v720
        %v790 = vadd.f32 %v436, %v723
        %v791 = vadd.f32 %v437, %v726
        %v792 = vadd.f32 %v438, %v729
        %v793 = vadd.f32 %v439, %v732
        %v794 = vadd.f32 %v440, %v735
        %v795 = vadd.f32 %v441, %v738
        %v796 = vadd.f32 %v442, %v741
        %v797 = vadd.f32 %v443, %v744
        %v798 = vadd.f32 %v444, %v747
        %v799 = vadd.f32 %v445, %v750
        %v800 = vadd.f32 %v446, %v753
        %v801 = vadd.f32 %v447, %v756
        %v802 = vadd.f32 %v448, %v759
        %v803 = vadd.f32 %v449, %v762
        %v804 = vadd.f32 %v450, %v765
        %v805 = vadd.f32 %v451, %v768
        %v806 = vadd.f32 %v452, %v771
        %v807 = vadd.f32 %v453, %v774
        %808 = vst [vmem:[#allocation2] sm:$0xff] %v776
        %809 = vst [vmem:[#allocation2 + $0x8] sm:$0xff] %v777
        %810 = vst [vmem:[#allocation2 + $0x10] sm:$0xff] %v778
        %811 = vst [vmem:[#allocation2 + $0x18] sm:$0xff] %v779
        %812 = vst [vmem:[#allocation2 + $0x20] sm:$0xff] %v780
        %813 = vst [vmem:[#allocation2 + $0x28] sm:$0xff] %v781
        %814 = vst [vmem:[#allocation2 + $0x30] sm:$0xff] %v782
        %815 = vst [vmem:[#allocation2 + $0x38] sm:$0xff] %v783
        %816 = vst [vmem:[#allocation2 + $0x40] sm:$0xff] %v784
        %817 = vst [vmem:[#allocation2 + $0x48] sm:$0xff] %v785
        %818 = vst [vmem:[#allocation2 + $0x50] sm:$0xff] %v786
        %819 = vst [vmem:[#allocation2 + $0x58] sm:$0xff] %v787
        %820 = vst [vmem:[#allocation2 + $0x60] sm:$0xff] %v788
        %821 = vst [vmem:[#allocation2 + $0x68] sm:$0xff] %v789
        %822 = vst [vmem:[#allocation2 + $0x70] sm:$0xff] %v790
        %823 = vst [vmem:[#allocation2 + $0x78] sm:$0xff] %v791
        %824 = vst [vmem:[#allocation2 + $0x80] sm:$0xff] %v792
        %825 = vst [vmem:[#allocation2 + $0x88] sm:$0xff] %v793
        %826 = vst [vmem:[#allocation2 + $0x90] sm:$0xff] %v794
        %827 = vst [vmem:[#allocation2 + $0x98] sm:$0xff] %v795
        %828 = vst [vmem:[#allocation2 + $0xa0] sm:$0xff] %v796
        %829 = vst [vmem:[#allocation2 + $0xa8] sm:$0xff] %v797
        %830 = vst [vmem:[#allocation2 + $0xb0] sm:$0xff] %v798
        %831 = vst [vmem:[#allocation2 + $0xb8] sm:$0xff] %v799
        %832 = vst [vmem:[#allocation2 + $0xc0] sm:$0xff] %v800
        %833 = vst [vmem:[#allocation2 + $0xc8] sm:$0xff] %v801
        %834 = vst [vmem:[#allocation2 + $0xd0] sm:$0xff] %v802
        %835 = vst [vmem:[#allocation2 + $0xd8] sm:$0xff] %v803
        %836 = vst [vmem:[#allocation2 + $0xe0] sm:$0xff] %v804
        %837 = vst [vmem:[#allocation2 + $0xe8] sm:$0xff] %v805
        %838 = vst [vmem:[#allocation2 + $0xf0] sm:$0xff] %v806
        %839 = vst [vmem:[#allocation2 + $0xf8] sm:$0xff] %v807
        %p840 = scmp.eq.s32.totalorder %s20, 1
        // Predicated region
        $region64: #{ndnet_forward.2} parent=54 // pred_check
          %p841 = pneg %p840
        $region65: #{ndnet_forward.2} parent=54 // pred_check_branch
          %843 = sbr.rel (%p841) target = $region67
        $region66: #{ndnet_forward.2} parent=54 // pred_region
          %v844 = vld [vmem:[#allocation2] sm:$0xff]
          %v845 = vld [vmem:[#allocation2 + $0x8] sm:$0xff]
          %v846 = vld [vmem:[#allocation2 + $0x10] sm:$0xff]
          %v847 = vld [vmem:[#allocation2 + $0x18] sm:$0xff]
          %v848 = vld [vmem:[#allocation2 + $0x20] sm:$0xff]
          %v849 = vld [vmem:[#allocation2 + $0x28] sm:$0xff]
          %v850 = vld [vmem:[#allocation2 + $0x30] sm:$0xff]
          %v851 = vld [vmem:[#allocation2 + $0x38] sm:$0xff]
          %v852 = vld [vmem:[#allocation2 + $0x40] sm:$0xff]
          %v853 = vld [vmem:[#allocation2 + $0x48] sm:$0xff]
          %v854 = vld [vmem:[#allocation2 + $0x50] sm:$0xff]
          %v855 = vld [vmem:[#allocation2 + $0x58] sm:$0xff]
          %v856 = vld [vmem:[#allocation2 + $0x60] sm:$0xff]
          %v857 = vld [vmem:[#allocation2 + $0x68] sm:$0xff]
          %v858 = vld [vmem:[#allocation2 + $0x70] sm:$0xff]
          %v859 = vld [vmem:[#allocation2 + $0x78] sm:$0xff]
          %v860 = vld [vmem:[#allocation2 + $0x80] sm:$0xff]
          %v861 = vld [vmem:[#allocation2 + $0x88] sm:$0xff]
          %v862 = vld [vmem:[#allocation2 + $0x90] sm:$0xff]
          %v863 = vld [vmem:[#allocation2 + $0x98] sm:$0xff]
          %v864 = vld [vmem:[#allocation2 + $0xa0] sm:$0xff]
          %v865 = vld [vmem:[#allocation2 + $0xa8] sm:$0xff]
          %v866 = vld [vmem:[#allocation2 + $0xb0] sm:$0xff]
          %v867 = vld [vmem:[#allocation2 + $0xb8] sm:$0xff]
          %v868 = vld [vmem:[#allocation2 + $0xc0] sm:$0xff]
          %v869 = vld [vmem:[#allocation2 + $0xc8] sm:$0xff]
          %v870 = vld [vmem:[#allocation2 + $0xd0] sm:$0xff]
          %v871 = vld [vmem:[#allocation2 + $0xd8] sm:$0xff]
          %v872 = vld [vmem:[#allocation2 + $0xe0] sm:$0xff]
          %v873 = vld [vmem:[#allocation2 + $0xe8] sm:$0xff]
          %v874 = vld [vmem:[#allocation2 + $0xf0] sm:$0xff]
          %v875 = vld [vmem:[#allocation2 + $0xf8] sm:$0xff]
          %v876 = vld [vmem:[%s2] sm:$0x1]
          %v878 = vperm.slane %v876, 0
          %v880 = vmul.f32 %v844, %v878
          %v881 = vmul.f32 %v845, %v878
          %v882 = vmul.f32 %v846, %v878
          %v883 = vmul.f32 %v847, %v878
          %v884 = vmul.f32 %v848, %v878
          %v885 = vmul.f32 %v849, %v878
          %v886 = vmul.f32 %v850, %v878
          %v887 = vmul.f32 %v851, %v878
          %v888 = vmul.f32 %v852, %v878
          %v889 = vmul.f32 %v853, %v878
          %v890 = vmul.f32 %v854, %v878
          %v891 = vmul.f32 %v855, %v878
          %v892 = vmul.f32 %v856, %v878
          %v893 = vmul.f32 %v857, %v878
          %v894 = vmul.f32 %v858, %v878
          %v895 = vmul.f32 %v859, %v878
          %v896 = vmul.f32 %v860, %v878
          %v897 = vmul.f32 %v861, %v878
          %v898 = vmul.f32 %v862, %v878
          %v899 = vmul.f32 %v863, %v878
          %v900 = vmul.f32 %v864, %v878
          %v901 = vmul.f32 %v865, %v878
          %v902 = vmul.f32 %v866, %v878
          %v903 = vmul.f32 %v867, %v878
          %v904 = vmul.f32 %v868, %v878
          %v905 = vmul.f32 %v869, %v878
          %v906 = vmul.f32 %v870, %v878
          %v907 = vmul.f32 %v871, %v878
          %v908 = vmul.f32 %v872, %v878
          %v909 = vmul.f32 %v873, %v878
          %v910 = vmul.f32 %v874, %v878
          %v911 = vmul.f32 %v875, %v878
          %v912 = vld [vmem:[%s3] sm:$0x1]
          %v914 = vperm.slane %v912, 0
          %v916 = vadd.f32 %v880, %v914
          %v917 = vadd.f32 %v881, %v914
          %v918 = vadd.f32 %v882, %v914
          %v919 = vadd.f32 %v883, %v914
          %v920 = vadd.f32 %v884, %v914
          %v921 = vadd.f32 %v885, %v914
          %v922 = vadd.f32 %v886, %v914
          %v923 = vadd.f32 %v887, %v914
          %v924 = vadd.f32 %v888, %v914
          %v925 = vadd.f32 %v889, %v914
          %v926 = vadd.f32 %v890, %v914
          %v927 = vadd.f32 %v891, %v914
          %v928 = vadd.f32 %v892, %v914
          %v929 = vadd.f32 %v893, %v914
          %v930 = vadd.f32 %v894, %v914
          %v931 = vadd.f32 %v895, %v914
          %v932 = vadd.f32 %v896, %v914
          %v933 = vadd.f32 %v897, %v914
          %v934 = vadd.f32 %v898, %v914
          %v935 = vadd.f32 %v899, %v914
          %v936 = vadd.f32 %v900, %v914
          %v937 = vadd.f32 %v901, %v914
          %v938 = vadd.f32 %v902, %v914
          %v939 = vadd.f32 %v903, %v914
          %v940 = vadd.f32 %v904, %v914
          %v941 = vadd.f32 %v905, %v914
          %v942 = vadd.f32 %v906, %v914
          %v943 = vadd.f32 %v907, %v914
          %v944 = vadd.f32 %v908, %v914
          %v945 = vadd.f32 %v909, %v914
          %v946 = vadd.f32 %v910, %v914
          %v947 = vadd.f32 %v911, %v914
          %v948 = vmax.f32 %v916, 0.0
          %v949 = vmax.f32 %v917, 0.0
          %v950 = vmax.f32 %v918, 0.0
          %v951 = vmax.f32 %v919, 0.0
          %v952 = vmax.f32 %v920, 0.0
          %v953 = vmax.f32 %v921, 0.0
          %v954 = vmax.f32 %v922, 0.0
          %v955 = vmax.f32 %v923, 0.0
          %v956 = vmax.f32 %v924, 0.0
          %v957 = vmax.f32 %v925, 0.0
          %v958 = vmax.f32 %v926, 0.0
          %v959 = vmax.f32 %v927, 0.0
          %v960 = vmax.f32 %v928, 0.0
          %v961 = vmax.f32 %v929, 0.0
          %v962 = vmax.f32 %v930, 0.0
          %v963 = vmax.f32 %v931, 0.0
          %v964 = vmax.f32 %v932, 0.0
          %v965 = vmax.f32 %v933, 0.0
          %v966 = vmax.f32 %v934, 0.0
          %v967 = vmax.f32 %v935, 0.0
          %v968 = vmax.f32 %v936, 0.0
          %v969 = vmax.f32 %v937, 0.0
          %v970 = vmax.f32 %v938, 0.0
          %v971 = vmax.f32 %v939, 0.0
          %v972 = vmax.f32 %v940, 0.0
          %v973 = vmax.f32 %v941, 0.0
          %v974 = vmax.f32 %v942, 0.0
          %v975 = vmax.f32 %v943, 0.0
          %v976 = vmax.f32 %v944, 0.0
          %v977 = vmax.f32 %v945, 0.0
          %v978 = vmax.f32 %v946, 0.0
          %v979 = vmax.f32 %v947, 0.0
          %980 = vst [vmem:[%s384] sm:$0xff] %v948
          %981 = vst [vmem:[%s384 + $0x8] sm:$0xff] %v949
          %982 = vst [vmem:[%s384 + $0x10] sm:$0xff] %v950
          %983 = vst [vmem:[%s384 + $0x18] sm:$0xff] %v951
          %984 = vst [vmem:[%s384 + $0x20] sm:$0xff] %v952
          %985 = vst [vmem:[%s384 + $0x28] sm:$0xff] %v953
          %986 = vst [vmem:[%s384 + $0x30] sm:$0xff] %v954
          %987 = vst [vmem:[%s384 + $0x38] sm:$0xff] %v955
          %988 = vst [vmem:[%s384 + $0x40] sm:$0xff] %v956
          %989 = vst [vmem:[%s384 + $0x48] sm:$0xff] %v957
          %990 = vst [vmem:[%s384 + $0x50] sm:$0xff] %v958
          %991 = vst [vmem:[%s384 + $0x58] sm:$0xff] %v959
          %992 = vst [vmem:[%s384 + $0x60] sm:$0xff] %v960
          %993 = vst [vmem:[%s384 + $0x68] sm:$0xff] %v961
          %994 = vst [vmem:[%s384 + $0x70] sm:$0xff] %v962
          %995 = vst [vmem:[%s384 + $0x78] sm:$0xff] %v963
          %996 = vst [vmem:[%s384 + $0x80] sm:$0xff] %v964
          %997 = vst [vmem:[%s384 + $0x88] sm:$0xff] %v965
          %998 = vst [vmem:[%s384 + $0x90] sm:$0xff] %v966
          %999 = vst [vmem:[%s384 + $0x98] sm:$0xff] %v967
          %1000 = vst [vmem:[%s384 + $0xa0] sm:$0xff] %v968
          %1001 = vst [vmem:[%s384 + $0xa8] sm:$0xff] %v969
          %1002 = vst [vmem:[%s384 + $0xb0] sm:$0xff] %v970
          %1003 = vst [vmem:[%s384 + $0xb8] sm:$0xff] %v971
          %1004 = vst [vmem:[%s384 + $0xc0] sm:$0xff] %v972
          %1005 = vst [vmem:[%s384 + $0xc8] sm:$0xff] %v973
          %1006 = vst [vmem:[%s384 + $0xd0] sm:$0xff] %v974
          %1007 = vst [vmem:[%s384 + $0xd8] sm:$0xff] %v975
          %1008 = vst [vmem:[%s384 + $0xe0] sm:$0xff] %v976
          %1009 = vst [vmem:[%s384 + $0xe8] sm:$0xff] %v977
          %1010 = vst [vmem:[%s384 + $0xf0] sm:$0xff] %v978
          %1011 = vst [vmem:[%s384 + $0xf8] sm:$0xff] %v979
        $region67: #{ndnet_forward.2} parent=54 // pred_fallthru
          _
        %s1012 = smul.u32 32, %s19
        %p1013 = scmp.lt.s32.totalorder %s1012, 31
        %s1014 = scalar_select %p1013, %s1012, 31
        %s1015 = smul.addr %s1014, 8
        %s1016 = scalar_lea.vmem %s4, %s1015
        // Predicated region
        $region68: #{ndnet_forward.2} parent=54 // pred_check
          %p1017 = pneg %p141
        $region69: #{ndnet_forward.2} parent=54 // pred_check_branch
          %1019 = sbr.rel (%p1017) target = $region71
        $region70: #{ndnet_forward.2} parent=54 // pred_region
          %s1020 = smul.u32 32, %s19
        $region71: #{ndnet_forward.2} parent=54 // pred_fallthru
          _
        // Predicated region
        $region72: #{ndnet_forward.2} parent=54 // pred_check
          %p1021 = pneg %p141
        $region73: #{ndnet_forward.2} parent=54 // pred_check_branch
          %1023 = sbr.rel (%p1021) target = $region75
        $region74: #{ndnet_forward.2} parent=54 // pred_region
          %s1024 = smul.u32 32, %s19
          %p1025 = scmp.lt.s32.totalorder %s1024, 31
          %s1026 = scalar_select %p1025, %s1024, 31
          %s1027 = smul.addr %s1026, 8
          %s1028 = scalar_lea.vmem %s4, %s1027
        $region75: #{ndnet_forward.2} parent=54 // pred_fallthru
          _
      $region55: #{ndnet_forward.2} parent=5 // pred_fallthru
        _
      %p1029 = scmp.le.s32.totalorder 2, %s10
      // Predicated region
      $region76: #{ndnet_forward.2} parent=5 // pred_check
        %p1030 = pneg %p1029
      $region77: #{ndnet_forward.2} parent=5 // pred_check_branch
        %1032 = sbr.rel (%p1030) target = $region79
      $region78: #{ndnet_forward.2} parent=5 // pred_region
        %s1033 = ssub.s32 %s10, 2
      $region79: #{ndnet_forward.2} parent=5 // pred_fallthru
        _
    $region6: #{ndnet_forward.2} parent=1 // loop_footer
      %s14 = sadd.s32 1, %s10
    $region7: #{ndnet_forward.2} parent=1 // loop_footer_branch
      %9 = sbr.rel target = $region3
    $region8: #{ndnet_forward.2} parent=1 // loop_exit
      _

</llo_original>
